<compile_context>
chip_gen: v7x
topology: tpu7x:2x2x1
jax: 0.10.0
libtpu: 0.0.40
codegen_flags: <defaults>
</compile_context>

<pallas_src>
import jax
import jax.numpy as jnp
from jax.experimental import pallas as pl
from jax.experimental.pallas import tpu as pltpu


def _round_up(x, m):
    return ((x + m - 1) // m) * m


def _pick_rows(H, W, target_lanes=512):
    """Rows per spatial chunk: whole rows, chunk <= ~512 lanes, divides H."""
    rows = max(1, min(H, max(1, target_lanes // W)))
    while H % rows:
        rows -= 1
    return rows


# -----------------------------------------------------------------------------
# Fused BasicBlock kernel (one image per grid step)
# -----------------------------------------------------------------------------
def _make_block_kernel(H, W, C, lead, L, CHUNK, n_chunks, slope):
    HW = H * W
    taps = [(dy, dx) for dy in range(3) for dx in range(3)]   # t = dy*3 + dx
    base = lead - (W + 1)                                     # lane offset of tap (0,0)

    def kernel(x_ref, w1_ref, w2_ref, s1_ref, b1_ref, s2_ref, b2_ref,
               sw1_ref, sb1_ref, sw2_ref, sb2_ref,
               out_ref,
               xp0, xp1, xp2, yp0, yp1, yp2, y2_ref, pool_ref):
        bf = jnp.bfloat16

        # Chunk-local column masks (CHUNK is a multiple of W -> same every chunk).
        col = jax.lax.broadcasted_iota(jnp.int32, (1, CHUNK), 1) % W
        keep0 = col != (W - 1)   # dx==0 copy: zero input column W-1
        keep2 = col != 0         # dx==2 copy: zero input column 0

        # Zero halos of all six haloed buffers (re-done every grid step so the
        # kernel stays correct under megacore sharding of the 'parallel' axis).
        zlead = jnp.zeros((C, lead), bf)
        ztail = jnp.zeros((C, L - lead - HW), bf)
        for ref in (xp0, xp1, xp2, yp0, yp1, yp2):
            ref[:, 0:lead] = zlead
            ref[:, lead + HW:L] = ztail

        # Stage the input image (bf16) into its three pre-masked haloed copies.
        for c in range(n_chunks):
            src = pl.ds(c * CHUNK, CHUNK)
            dst = pl.ds(lead + c * CHUNK, CHUNK)
            xc = x_ref[:, src].astype(bf)
            xp1[:, dst] = xc
            xp0[:, dst] = jnp.where(keep0, xc, 0)
            xp2[:, dst] = jnp.where(keep2, xc, 0)

        def conv_chunk(pads, w_ref, scale, bias, c):
            """3x3 same-padding conv + folded ABN for one spatial chunk (f32)."""
            acc = jnp.zeros((C, CHUNK), jnp.float32)
            for t, (dy, dx) in enumerate(taps):
                off = base + dy * W + dx + c * CHUNK          # static offset
                xs = pads[dx][:, pl.ds(off, CHUNK)]           # pure slice, no mask
                acc = acc + jnp.dot(w_ref[t], xs,
                                    preferred_element_type=jnp.float32)
            return acc * scale + bias

        # conv1 + InPlaceABN(leaky_relu, 0.001): write y1's three haloed copies.
        s1 = s1_ref[...]
        b1 = b1_ref[...]
        for c in range(n_chunks):
            y1 = conv_chunk((xp0, xp1, xp2), w1_ref, s1, b1, c)
            y1 = jnp.where(y1 >= 0.0, y1, y1 * slope)
            y1b = y1.astype(bf)
            dst = pl.ds(lead + c * CHUNK, CHUNK)
            yp1[:, dst] = y1b
            yp0[:, dst] = jnp.where(keep0, y1b, 0)
            yp2[:, dst] = jnp.where(keep2, y1b, 0)

        # conv2 + InPlaceABN(identity): keep y2 resident in f32 + channel sums.
        s2 = s2_ref[...]
        b2 = b2_ref[...]
        pool_ref[...] = jnp.zeros((C, 1), jnp.float32)
        for c in range(n_chunks):
            y2 = conv_chunk((yp0, yp1, yp2), w2_ref, s2, b2, c)
            y2_ref[:, pl.ds(c * CHUNK, CHUNK)] = y2
            pool_ref[...] += jnp.sum(y2, axis=1, keepdims=True)

        # SE squeeze/excite: tiny mat-vecs, entirely in VMEM.
        p = pool_ref[...] * (1.0 / HW)                                    # (C, 1)
        h = jnp.dot(sw1_ref[...], p, preferred_element_type=jnp.float32)  # (R, 1)
        h = jnp.maximum(h + sb1_ref[...], 0.0)
        g = jnp.dot(sw2_ref[...], h, preferred_element_type=jnp.float32)  # (C, 1)
        g = jax.nn.sigmoid(g + sb2_ref[...])

        # Channel gate + residual add + final ReLU (chunked, lane-dense stores).
        for c in range(n_chunks):
            sl = pl.ds(c * CHUNK, CHUNK)
            res = x_ref[:, sl].astype(jnp.float32)
            o = jnp.maximum(y2_ref[:, sl] * g + res, 0.0)
            out_ref[:, sl] = o.astype(out_ref.dtype)

    return kernel


# -----------------------------------------------------------------------------
# BasicBlock forward (stride=1, downsample=None, use_se=True)
# -----------------------------------------------------------------------------
@jax.jit
def basic_block_forward(x_nchw, params):
    N, C, H, W = x_nchw.shape
    HW = H * W
    R = params["se_w1"].shape[0]
    # Default config: residual add requires inplanes == planes.
    assert params["conv1_w"].shape[1] == C and params["conv1_w"].shape[2] == C

    lead = _round_up(W + 1, 128)            # lane-aligned leading halo
    assert lead >= W + 1
    L = _round_up(lead + HW + W + 1, 128)   # haloed-buffer lane extent
    rows = _pick_rows(H, W)
    CHUNK = rows * W
    n_chunks = H // rows
    assert n_chunks * CHUNK == HW

    x = x_nchw.reshape(N, C, HW)            # NCHW-flat: channels->sublanes, HW->lanes
    w1 = params["conv1_w"].astype(jnp.bfloat16)
    w2 = params["conv2_w"].astype(jnp.bfloat16)

    kernel = _make_block_kernel(H, W, C, lead, L, CHUNK, n_chunks, slope=0.001)

    out = pl.pallas_call(
        kernel,
        out_shape=jax.ShapeDtypeStruct((N, C, HW), x_nchw.dtype),
        grid_spec=pltpu.PrefetchScalarGridSpec(
            num_scalar_prefetch=0,
            grid=(N,),
            in_specs=[
                pl.BlockSpec((None, C, HW), lambda n: (n, 0, 0)),   # x (per image)
                pl.BlockSpec((9, C, C), lambda n: (0, 0, 0)),       # conv1 taps (resident)
                pl.BlockSpec((9, C, C), lambda n: (0, 0, 0)),       # conv2 taps (resident)
                pl.BlockSpec((C, 1), lambda n: (0, 0)),             # bn1 scale
                pl.BlockSpec((C, 1), lambda n: (0, 0)),             # bn1 bias
                pl.BlockSpec((C, 1), lambda n: (0, 0)),             # bn2 scale
                pl.BlockSpec((C, 1), lambda n: (0, 0)),             # bn2 bias
                pl.BlockSpec((R, C), lambda n: (0, 0)),             # se fc1 weight
                pl.BlockSpec((R, 1), lambda n: (0, 0)),             # se fc1 bias
                pl.BlockSpec((C, R), lambda n: (0, 0)),             # se fc2 weight
                pl.BlockSpec((C, 1), lambda n: (0, 0)),             # se fc2 bias
            ],
            out_specs=pl.BlockSpec((None, C, HW), lambda n: (n, 0, 0)),
            scratch_shapes=[
                pltpu.VMEM((C, L), jnp.bfloat16),   # x haloed, col W-1 zeroed (dx==0 taps)
                pltpu.VMEM((C, L), jnp.bfloat16),   # x haloed, unmasked       (dx==1 taps)
                pltpu.VMEM((C, L), jnp.bfloat16),   # x haloed, col 0 zeroed   (dx==2 taps)
                pltpu.VMEM((C, L), jnp.bfloat16),   # y1 haloed (dx==0)
                pltpu.VMEM((C, L), jnp.bfloat16),   # y1 haloed (dx==1)
                pltpu.VMEM((C, L), jnp.bfloat16),   # y1 haloed (dx==2)
                pltpu.VMEM((C, HW), jnp.float32),   # y2 (pre-gate), f32 resident
                pltpu.VMEM((C, 1), jnp.float32),    # SE pool channel sums
            ],
        ),
        compiler_params=pltpu.CompilerParams(
            dimension_semantics=("parallel",),
            vmem_limit_bytes=48 * 1024 * 1024,      # fits v7x's 64 MiB/TC with headroom
        ),
    )(x, w1, w2,
      params["bn1_scale"], params["bn1_bias"],
      params["bn2_scale"], params["bn2_bias"],
      params["se_w1"], params["se_b1"], params["se_w2"], params["se_b2"])

    return out.reshape(N, C, H, W)


# -----------------------------------------------------------------------------
# Parameters (InPlaceABN folded to inference-mode scale/bias)
# -----------------------------------------------------------------------------
def init_params(key, inplanes, planes):
    ks = jax.random.split(key, 8)
    eps = 1e-5  # InPlaceABN default

    # tap-major conv weights: w[dy*3 + dx] == W_pytorch[:, :, dy, dx]  (Cout, Cin)
    conv1_w = 0.1 * jax.random.normal(ks[0], (9, planes, inplanes), jnp.float32)
    conv2_w = 0.1 * jax.random.normal(ks[1], (9, planes, planes), jnp.float32)

    def abn(k, c):
        k1, k2, k3, k4 = jax.random.split(k, 4)
        gamma = 1.0 + 0.1 * jax.random.normal(k1, (c,), jnp.float32)
        beta = 0.1 * jax.random.normal(k2, (c,), jnp.float32)
        mean = 0.1 * jax.random.normal(k3, (c,), jnp.float32)
        var = jnp.abs(jax.random.normal(k4, (c,), jnp.float32)) + 0.5
        scale = gamma / jnp.sqrt(var + eps)
        bias = beta - mean * scale
        return scale.reshape(c, 1), bias.reshape(c, 1)

    bn1_scale, bn1_bias = abn(ks[2], planes)
    bn2_scale, bn2_bias = abn(ks[3], planes)

    # SEModule: reduce_layer_planes = max(planes * expansion // 4, 64)
    r = max(planes * 1 // 4, 64)
    se_w1 = 0.1 * jax.random.normal(ks[4], (r, planes), jnp.float32)   # fc1: (R, C)
    se_b1 = 0.1 * jax.random.normal(ks[5], (r, 1), jnp.float32)
    se_w2 = 0.1 * jax.random.normal(ks[6], (planes, r), jnp.float32)   # fc2: (C, R)
    se_b2 = 0.1 * jax.random.normal(ks[7], (planes, 1), jnp.float32)

    return dict(conv1_w=conv1_w, bn1_scale=bn1_scale, bn1_bias=bn1_bias,
                conv2_w=conv2_w, bn2_scale=bn2_scale, bn2_bias=bn2_bias,
                se_w1=se_w1, se_b1=se_b1, se_w2=se_w2, se_b2=se_b2)


# -----------------------------------------------------------------------------
# Pure-JAX reference (mirrors the kernel's bf16 rounding of conv inputs/weights)
# -----------------------------------------------------------------------------
def _reference_forward(x, params):
    bf = jnp.bfloat16

    def conv(xx, w_taps, scale, bias, slope):
        cout, cin = w_taps.shape[1], w_taps.shape[2]
        w = jnp.transpose(w_taps.reshape(3, 3, cout, cin), (2, 3, 0, 1))  # OIHW
        w = w.astype(bf).astype(jnp.float32)
        xx = xx.astype(bf).astype(jnp.float32)
        y = jax.lax.conv_general_dilated(
            xx, w, window_strides=(1, 1), padding="SAME",
            dimension_numbers=("NCHW", "OIHW", "NCHW"),
            precision=jax.lax.Precision.HIGHEST)
        y = y * scale.reshape(1, -1, 1, 1) + bias.reshape(1, -1, 1, 1)
        if slope is not None:
            y = jnp.where(y >= 0.0, y, y * slope)
        return y

    y1 = conv(x, params["conv1_w"], params["bn1_scale"], params["bn1_bias"], 0.001)
    y2 = conv(y1, params["conv2_w"], params["bn2_scale"], params["bn2_bias"], None)
    p = y2.mean(axis=(2, 3))                                        # (N, C)
    h = jnp.maximum(p @ params["se_w1"].T + params["se_b1"][:, 0], 0.0)
    s = jax.nn.sigmoid(h @ params["se_w2"].T + params["se_b2"][:, 0])
    return jnp.maximum(y2 * s[:, :, None, None] + x, 0.0)


if __name__ == "__main__":
    key = jax.random.PRNGKey(0)
    kx, kp = jax.random.split(key)
    N, C, H, W = 2, 4, 16, 16                     # inplanes = planes = 4, stride = 1
    x = jax.random.normal(kx, (N, C, H, W), jnp.float32)
    params = init_params(kp, inplanes=C, planes=C)

    out = basic_block_forward(x, params)
    jax.block_until_ready(out)
    assert out.shape == (N, C, H, W), out.shape
    assert bool(jnp.all(out >= 0.0))              # final ReLU sanity check

    ref = _reference_forward(x, params)
    assert bool(jnp.allclose(out, ref, atol=2e-2, rtol=2e-2)), (
        float(jnp.max(jnp.abs(out - ref))))

    print("KERNEL_OK")
</pallas_src>

<mosaic_0001>
module attributes {stable_mosaic.version = 11 : i64} {
  func.func @kernel(%arg0: i32, %arg1: memref<1x4x256xf32, #tpu.memory_space<vmem>>, %arg2: memref<9x4x4xbf16, #tpu.memory_space<vmem>>, %arg3: memref<9x4x4xbf16, #tpu.memory_space<vmem>>, %arg4: memref<4x1xf32, #tpu.memory_space<vmem>>, %arg5: memref<4x1xf32, #tpu.memory_space<vmem>>, %arg6: memref<4x1xf32, #tpu.memory_space<vmem>>, %arg7: memref<4x1xf32, #tpu.memory_space<vmem>>, %arg8: memref<64x4xf32, #tpu.memory_space<vmem>>, %arg9: memref<64x1xf32, #tpu.memory_space<vmem>>, %arg10: memref<4x64xf32, #tpu.memory_space<vmem>>, %arg11: memref<4x1xf32, #tpu.memory_space<vmem>>, %arg12: memref<1x4x256xf32, #tpu.memory_space<vmem>>, %arg13: memref<4x512xbf16, #tpu.memory_space<vmem>>, %arg14: memref<4x512xbf16, #tpu.memory_space<vmem>>, %arg15: memref<4x512xbf16, #tpu.memory_space<vmem>>, %arg16: memref<4x512xbf16, #tpu.memory_space<vmem>>, %arg17: memref<4x512xbf16, #tpu.memory_space<vmem>>, %arg18: memref<4x512xbf16, #tpu.memory_space<vmem>>, %arg19: memref<4x256xf32, #tpu.memory_space<vmem>>, %arg20: memref<4x1xf32, #tpu.memory_space<vmem>>) attributes {dimension_semantics = [#tpu.dimension_semantics<parallel>], iteration_bounds = array<i64: 2>, scalar_prefetch = 0 : i64, scratch_operands = 8 : i64, tpu.core_type = #tpu.core_type<tc>, window_params = [{transform_indices = @transform_0, window_bounds = array<i64: 1, 4, 256>}, {pipeline_mode = #tpu.pipeline_mode<synchronous>, transform_indices = @transform_1, window_bounds = array<i64: 9, 4, 4>}, {pipeline_mode = #tpu.pipeline_mode<synchronous>, transform_indices = @transform_2, window_bounds = array<i64: 9, 4, 4>}, {pipeline_mode = #tpu.pipeline_mode<synchronous>, transform_indices = @transform_3, window_bounds = array<i64: 4, 1>}, {pipeline_mode = #tpu.pipeline_mode<synchronous>, transform_indices = @transform_4, window_bounds = array<i64: 4, 1>}, {pipeline_mode = #tpu.pipeline_mode<synchronous>, transform_indices = @transform_5, window_bounds = array<i64: 4, 1>}, {pipeline_mode = #tpu.pipeline_mode<synchronous>, transform_indices = @transform_6, window_bounds = array<i64: 4, 1>}, {pipeline_mode = #tpu.pipeline_mode<synchronous>, transform_indices = @transform_7, window_bounds = array<i64: 64, 4>}, {pipeline_mode = #tpu.pipeline_mode<synchronous>, transform_indices = @transform_8, window_bounds = array<i64: 64, 1>}, {pipeline_mode = #tpu.pipeline_mode<synchronous>, transform_indices = @transform_9, window_bounds = array<i64: 4, 64>}, {pipeline_mode = #tpu.pipeline_mode<synchronous>, transform_indices = @transform_10, window_bounds = array<i64: 4, 1>}, {transform_indices = @transform_11, window_bounds = array<i64: 1, 4, 256>}]} {
    %0 = tpu.iota {dimensions = array<i32: 1>} : vector<1x256xi32>
    %c16_i32 = arith.constant 16 : i32
    %c0_i32 = arith.constant 0 : i32
    %1 = arith.cmpi eq, %c16_i32, %c0_i32 : i32
    %c1_i32 = arith.constant 1 : i32
    %2 = arith.select %1, %c1_i32, %c16_i32 : i32
    %3 = vector.broadcast %2 : i32 to vector<1x256xi32>
    %4 = arith.remsi %0, %3 : vector<1x256xi32>
    %c0_i32_0 = arith.constant 0 : i32
    %5 = vector.broadcast %c0_i32_0 : i32 to vector<1x256xi32>
    %6 = arith.cmpi ne, %4, %5 : vector<1x256xi32>
    %c0_i32_1 = arith.constant 0 : i32
    %7 = vector.broadcast %c0_i32_1 : i32 to vector<1x256xi32>
    %8 = arith.cmpi slt, %4, %7 : vector<1x256xi32>
    %c0_i32_2 = arith.constant 0 : i32
    %9 = arith.cmpi slt, %2, %c0_i32_2 : i32
    %10 = vector.broadcast %9 : i1 to vector<1x256xi1>
    %11 = vector.broadcast %10 : vector<1x256xi1> to vector<1x256xi1>
    %12 = arith.xori %8, %11 : vector<1x256xi1>
    %13 = arith.andi %12, %6 : vector<1x256xi1>
    %14 = vector.broadcast %2 : i32 to vector<1x256xi32>
    %15 = arith.addi %4, %14 : vector<1x256xi32>
    %16 = arith.select %13, %15, %4 : vector<1x256xi1>, vector<1x256xi32>
    %c15_i32 = arith.constant 15 : i32
    %17 = vector.broadcast %c15_i32 : i32 to vector<1x256xi32>
    %18 = arith.cmpi ne, %16, %17 : vector<1x256xi32>
    %c0_i32_3 = arith.constant 0 : i32
    %19 = vector.broadcast %c0_i32_3 : i32 to vector<1x256xi32>
    %20 = arith.cmpi ne, %16, %19 : vector<1x256xi32>
    %cst = arith.constant 0.000000e+00 : bf16
    %21 = vector.broadcast %cst : bf16 to vector<4x128xbf16>
    %cst_4 = arith.constant 0.000000e+00 : bf16
    %22 = vector.broadcast %cst_4 : bf16 to vector<4x128xbf16>
    %c0 = arith.constant 0 : index
    %c0_5 = arith.constant 0 : index
    %23 = vector.load %arg13[%c0, %c0_5] : memref<4x512xbf16, #tpu.memory_space<vmem>>, vector<4x128xbf16>
    tpu.vector_store %arg13[%c0, %c0_5], %21 {strides = array<i32>} : memref<4x512xbf16, #tpu.memory_space<vmem>>, vector<4x128xbf16>,
    %c0_6 = arith.constant 0 : index
    %c384 = arith.constant 384 : index
    %24 = vector.load %arg13[%c0_6, %c384] : memref<4x512xbf16, #tpu.memory_space<vmem>>, vector<4x128xbf16>
    tpu.vector_store %arg13[%c0_6, %c384], %22 {strides = array<i32>} : memref<4x512xbf16, #tpu.memory_space<vmem>>, vector<4x128xbf16>,
    %c0_7 = arith.constant 0 : index
    %c0_8 = arith.constant 0 : index
    %25 = vector.load %arg14[%c0_7, %c0_8] : memref<4x512xbf16, #tpu.memory_space<vmem>>, vector<4x128xbf16>
    tpu.vector_store %arg14[%c0_7, %c0_8], %21 {strides = array<i32>} : memref<4x512xbf16, #tpu.memory_space<vmem>>, vector<4x128xbf16>,
    %c0_9 = arith.constant 0 : index
    %c384_10 = arith.constant 384 : index
    %26 = vector.load %arg14[%c0_9, %c384_10] : memref<4x512xbf16, #tpu.memory_space<vmem>>, vector<4x128xbf16>
    tpu.vector_store %arg14[%c0_9, %c384_10], %22 {strides = array<i32>} : memref<4x512xbf16, #tpu.memory_space<vmem>>, vector<4x128xbf16>,
    %c0_11 = arith.constant 0 : index
    %c0_12 = arith.constant 0 : index
    %27 = vector.load %arg15[%c0_11, %c0_12] : memref<4x512xbf16, #tpu.memory_space<vmem>>, vector<4x128xbf16>
    tpu.vector_store %arg15[%c0_11, %c0_12], %21 {strides = array<i32>} : memref<4x512xbf16, #tpu.memory_space<vmem>>, vector<4x128xbf16>,
    %c0_13 = arith.constant 0 : index
    %c384_14 = arith.constant 384 : index
    %28 = vector.load %arg15[%c0_13, %c384_14] : memref<4x512xbf16, #tpu.memory_space<vmem>>, vector<4x128xbf16>
    tpu.vector_store %arg15[%c0_13, %c384_14], %22 {strides = array<i32>} : memref<4x512xbf16, #tpu.memory_space<vmem>>, vector<4x128xbf16>,
    %c0_15 = arith.constant 0 : index
    %c0_16 = arith.constant 0 : index
    %29 = vector.load %arg16[%c0_15, %c0_16] : memref<4x512xbf16, #tpu.memory_space<vmem>>, vector<4x128xbf16>
    tpu.vector_store %arg16[%c0_15, %c0_16], %21 {strides = array<i32>} : memref<4x512xbf16, #tpu.memory_space<vmem>>, vector<4x128xbf16>,
    %c0_17 = arith.constant 0 : index
    %c384_18 = arith.constant 384 : index
    %30 = vector.load %arg16[%c0_17, %c384_18] : memref<4x512xbf16, #tpu.memory_space<vmem>>, vector<4x128xbf16>
    tpu.vector_store %arg16[%c0_17, %c384_18], %22 {strides = array<i32>} : memref<4x512xbf16, #tpu.memory_space<vmem>>, vector<4x128xbf16>,
    %c0_19 = arith.constant 0 : index
    %c0_20 = arith.constant 0 : index
    %31 = vector.load %arg17[%c0_19, %c0_20] : memref<4x512xbf16, #tpu.memory_space<vmem>>, vector<4x128xbf16>
    tpu.vector_store %arg17[%c0_19, %c0_20], %21 {strides = array<i32>} : memref<4x512xbf16, #tpu.memory_space<vmem>>, vector<4x128xbf16>,
    %c0_21 = arith.constant 0 : index
    %c384_22 = arith.constant 384 : index
    %32 = vector.load %arg17[%c0_21, %c384_22] : memref<4x512xbf16, #tpu.memory_space<vmem>>, vector<4x128xbf16>
    tpu.vector_store %arg17[%c0_21, %c384_22], %22 {strides = array<i32>} : memref<4x512xbf16, #tpu.memory_space<vmem>>, vector<4x128xbf16>,
    %c0_23 = arith.constant 0 : index
    %c0_24 = arith.constant 0 : index
    %33 = vector.load %arg18[%c0_23, %c0_24] : memref<4x512xbf16, #tpu.memory_space<vmem>>, vector<4x128xbf16>
    tpu.vector_store %arg18[%c0_23, %c0_24], %21 {strides = array<i32>} : memref<4x512xbf16, #tpu.memory_space<vmem>>, vector<4x128xbf16>,
    %c0_25 = arith.constant 0 : index
    %c384_26 = arith.constant 384 : index
    %34 = vector.load %arg18[%c0_25, %c384_26] : memref<4x512xbf16, #tpu.memory_space<vmem>>, vector<4x128xbf16>
    tpu.vector_store %arg18[%c0_25, %c384_26], %22 {strides = array<i32>} : memref<4x512xbf16, #tpu.memory_space<vmem>>, vector<4x128xbf16>,
    %c0_27 = arith.constant 0 : index
    %c0_28 = arith.constant 0 : index
    %c0_29 = arith.constant 0 : index
    %35 = vector.load %arg1[%c0_27, %c0_28, %c0_29] : memref<1x4x256xf32, #tpu.memory_space<vmem>>, vector<1x4x256xf32>
    %36 = vector.shape_cast %35 : vector<1x4x256xf32> to vector<4x256xf32>
    %37 = arith.truncf %36 : vector<4x256xf32> to vector<4x256xbf16>
    %c0_30 = arith.constant 0 : index
    %c128 = arith.constant 128 : index
    %38 = vector.load %arg14[%c0_30, %c128] : memref<4x512xbf16, #tpu.memory_space<vmem>>, vector<4x256xbf16>
    tpu.vector_store %arg14[%c0_30, %c128], %37 {strides = array<i32>} : memref<4x512xbf16, #tpu.memory_space<vmem>>, vector<4x256xbf16>,
    %c0_i32_31 = arith.constant 0 : i32
    %39 = arith.sitofp %c0_i32_31 : i32 to bf16
    %40 = vector.shape_cast %18 : vector<1x256xi1> to vector<1x256xi1>
    %41 = vector.broadcast %40 : vector<1x256xi1> to vector<4x256xi1>
    %42 = vector.broadcast %39 : bf16 to vector<4x256xbf16>
    %43 = arith.select %41, %37, %42 : vector<4x256xi1>, vector<4x256xbf16>
    %c0_32 = arith.constant 0 : index
    %c128_33 = arith.constant 128 : index
    %44 = vector.load %arg13[%c0_32, %c128_33] : memref<4x512xbf16, #tpu.memory_space<vmem>>, vector<4x256xbf16>
    tpu.vector_store %arg13[%c0_32, %c128_33], %43 {strides = array<i32>} : memref<4x512xbf16, #tpu.memory_space<vmem>>, vector<4x256xbf16>,
    %c0_i32_34 = arith.constant 0 : i32
    %45 = arith.sitofp %c0_i32_34 : i32 to bf16
    %46 = vector.shape_cast %20 : vector<1x256xi1> to vector<1x256xi1>
    %47 = vector.broadcast %46 : vector<1x256xi1> to vector<4x256xi1>
    %48 = vector.broadcast %45 : bf16 to vector<4x256xbf16>
    %49 = arith.select %47, %37, %48 : vector<4x256xi1>, vector<4x256xbf16>
    %c0_35 = arith.constant 0 : index
    %c128_36 = arith.constant 128 : index
    %50 = vector.load %arg15[%c0_35, %c128_36] : memref<4x512xbf16, #tpu.memory_space<vmem>>, vector<4x256xbf16>
    tpu.vector_store %arg15[%c0_35, %c128_36], %49 {strides = array<i32>} : memref<4x512xbf16, #tpu.memory_space<vmem>>, vector<4x256xbf16>,
    %c0_37 = arith.constant 0 : index
    %c0_38 = arith.constant 0 : index
    %51 = vector.load %arg4[%c0_37, %c0_38] : memref<4x1xf32, #tpu.memory_space<vmem>>, vector<4x1xf32>
    %c0_39 = arith.constant 0 : index
    %c0_40 = arith.constant 0 : index
    %52 = vector.load %arg5[%c0_39, %c0_40] : memref<4x1xf32, #tpu.memory_space<vmem>>, vector<4x1xf32>
    %cst_41 = arith.constant 0.000000e+00 : f32
    %53 = vector.broadcast %cst_41 : f32 to vector<4x256xf32>
    %c0_42 = arith.constant 0 : index
    %c111 = arith.constant 111 : index
    %54 = vector.load %arg13[%c0_42, %c111] : memref<4x512xbf16, #tpu.memory_space<vmem>>, vector<4x256xbf16>
    %c0_43 = arith.constant 0 : index
    %c0_44 = arith.constant 0 : index
    %c0_45 = arith.constant 0 : index
    %55 = vector.load %arg2[%c0_43, %c0_44, %c0_45] : memref<9x4x4xbf16, #tpu.memory_space<vmem>>, vector<1x4x4xbf16>
    %56 = vector.shape_cast %55 : vector<1x4x4xbf16> to vector<4x4xbf16>
    %cst_46 = arith.constant dense<0.000000e+00> : vector<4x256xf32>
    %57 = tpu.matmul %56, %54, %cst_46 {dimension_numbers = #tpu.dot_dimension_numbers<[1], [0], [0], [1], [0, 0, 1, 1], [], []>} : vector<4x4xbf16>, vector<4x256xbf16>, vector<4x256xf32> -> vector<4x256xf32>
    %58 = arith.addf %53, %57 : vector<4x256xf32>
    %c0_47 = arith.constant 0 : index
    %c112 = arith.constant 112 : index
    %59 = vector.load %arg14[%c0_47, %c112] : memref<4x512xbf16, #tpu.memory_space<vmem>>, vector<4x256xbf16>
    %c1 = arith.constant 1 : index
    %c0_48 = arith.constant 0 : index
    %c0_49 = arith.constant 0 : index
    %60 = vector.load %arg2[%c1, %c0_48, %c0_49] : memref<9x4x4xbf16, #tpu.memory_space<vmem>>, vector<1x4x4xbf16>
    %61 = vector.shape_cast %60 : vector<1x4x4xbf16> to vector<4x4xbf16>
    %cst_50 = arith.constant dense<0.000000e+00> : vector<4x256xf32>
    %62 = tpu.matmul %61, %59, %cst_50 {dimension_numbers = #tpu.dot_dimension_numbers<[1], [0], [0], [1], [0, 0, 1, 1], [], []>} : vector<4x4xbf16>, vector<4x256xbf16>, vector<4x256xf32> -> vector<4x256xf32>
    %63 = arith.addf %58, %62 : vector<4x256xf32>
    %c0_51 = arith.constant 0 : index
    %c113 = arith.constant 113 : index
    %64 = vector.load %arg15[%c0_51, %c113] : memref<4x512xbf16, #tpu.memory_space<vmem>>, vector<4x256xbf16>
    %c2 = arith.constant 2 : index
    %c0_52 = arith.constant 0 : index
    %c0_53 = arith.constant 0 : index
    %65 = vector.load %arg2[%c2, %c0_52, %c0_53] : memref<9x4x4xbf16, #tpu.memory_space<vmem>>, vector<1x4x4xbf16>
    %66 = vector.shape_cast %65 : vector<1x4x4xbf16> to vector<4x4xbf16>
    %cst_54 = arith.constant dense<0.000000e+00> : vector<4x256xf32>
    %67 = tpu.matmul %66, %64, %cst_54 {dimension_numbers = #tpu.dot_dimension_numbers<[1], [0], [0], [1], [0, 0, 1, 1], [], []>} : vector<4x4xbf16>, vector<4x256xbf16>, vector<4x256xf32> -> vector<4x256xf32>
    %68 = arith.addf %63, %67 : vector<4x256xf32>
    %c0_55 = arith.constant 0 : index
    %c127 = arith.constant 127 : index
    %69 = vector.load %arg13[%c0_55, %c127] : memref<4x512xbf16, #tpu.memory_space<vmem>>, vector<4x256xbf16>
    %c3 = arith.constant 3 : index
    %c0_56 = arith.constant 0 : index
    %c0_57 = arith.constant 0 : index
    %70 = vector.load %arg2[%c3, %c0_56, %c0_57] : memref<9x4x4xbf16, #tpu.memory_space<vmem>>, vector<1x4x4xbf16>
    %71 = vector.shape_cast %70 : vector<1x4x4xbf16> to vector<4x4xbf16>
    %cst_58 = arith.constant dense<0.000000e+00> : vector<4x256xf32>
    %72 = tpu.matmul %71, %69, %cst_58 {dimension_numbers = #tpu.dot_dimension_numbers<[1], [0], [0], [1], [0, 0, 1, 1], [], []>} : vector<4x4xbf16>, vector<4x256xbf16>, vector<4x256xf32> -> vector<4x256xf32>
    %73 = arith.addf %68, %72 : vector<4x256xf32>
    %c0_59 = arith.constant 0 : index
    %c128_60 = arith.constant 128 : index
    %74 = vector.load %arg14[%c0_59, %c128_60] : memref<4x512xbf16, #tpu.memory_space<vmem>>, vector<4x256xbf16>
    %c4 = arith.constant 4 : index
    %c0_61 = arith.constant 0 : index
    %c0_62 = arith.constant 0 : index
    %75 = vector.load %arg2[%c4, %c0_61, %c0_62] : memref<9x4x4xbf16, #tpu.memory_space<vmem>>, vector<1x4x4xbf16>
    %76 = vector.shape_cast %75 : vector<1x4x4xbf16> to vector<4x4xbf16>
    %cst_63 = arith.constant dense<0.000000e+00> : vector<4x256xf32>
    %77 = tpu.matmul %76, %74, %cst_63 {dimension_numbers = #tpu.dot_dimension_numbers<[1], [0], [0], [1], [0, 0, 1, 1], [], []>} : vector<4x4xbf16>, vector<4x256xbf16>, vector<4x256xf32> -> vector<4x256xf32>
    %78 = arith.addf %73, %77 : vector<4x256xf32>
    %c0_64 = arith.constant 0 : index
    %c129 = arith.constant 129 : index
    %79 = vector.load %arg15[%c0_64, %c129] : memref<4x512xbf16, #tpu.memory_space<vmem>>, vector<4x256xbf16>
    %c5 = arith.constant 5 : index
    %c0_65 = arith.constant 0 : index
    %c0_66 = arith.constant 0 : index
    %80 = vector.load %arg2[%c5, %c0_65, %c0_66] : memref<9x4x4xbf16, #tpu.memory_space<vmem>>, vector<1x4x4xbf16>
    %81 = vector.shape_cast %80 : vector<1x4x4xbf16> to vector<4x4xbf16>
    %cst_67 = arith.constant dense<0.000000e+00> : vector<4x256xf32>
    %82 = tpu.matmul %81, %79, %cst_67 {dimension_numbers = #tpu.dot_dimension_numbers<[1], [0], [0], [1], [0, 0, 1, 1], [], []>} : vector<4x4xbf16>, vector<4x256xbf16>, vector<4x256xf32> -> vector<4x256xf32>
    %83 = arith.addf %78, %82 : vector<4x256xf32>
    %c0_68 = arith.constant 0 : index
    %c143 = arith.constant 143 : index
    %84 = vector.load %arg13[%c0_68, %c143] : memref<4x512xbf16, #tpu.memory_space<vmem>>, vector<4x256xbf16>
    %c6 = arith.constant 6 : index
    %c0_69 = arith.constant 0 : index
    %c0_70 = arith.constant 0 : index
    %85 = vector.load %arg2[%c6, %c0_69, %c0_70] : memref<9x4x4xbf16, #tpu.memory_space<vmem>>, vector<1x4x4xbf16>
    %86 = vector.shape_cast %85 : vector<1x4x4xbf16> to vector<4x4xbf16>
    %cst_71 = arith.constant dense<0.000000e+00> : vector<4x256xf32>
    %87 = tpu.matmul %86, %84, %cst_71 {dimension_numbers = #tpu.dot_dimension_numbers<[1], [0], [0], [1], [0, 0, 1, 1], [], []>} : vector<4x4xbf16>, vector<4x256xbf16>, vector<4x256xf32> -> vector<4x256xf32>
    %88 = arith.addf %83, %87 : vector<4x256xf32>
    %c0_72 = arith.constant 0 : index
    %c144 = arith.constant 144 : index
    %89 = vector.load %arg14[%c0_72, %c144] : memref<4x512xbf16, #tpu.memory_space<vmem>>, vector<4x256xbf16>
    %c7 = arith.constant 7 : index
    %c0_73 = arith.constant 0 : index
    %c0_74 = arith.constant 0 : index
    %90 = vector.load %arg2[%c7, %c0_73, %c0_74] : memref<9x4x4xbf16, #tpu.memory_space<vmem>>, vector<1x4x4xbf16>
    %91 = vector.shape_cast %90 : vector<1x4x4xbf16> to vector<4x4xbf16>
    %cst_75 = arith.constant dense<0.000000e+00> : vector<4x256xf32>
    %92 = tpu.matmul %91, %89, %cst_75 {dimension_numbers = #tpu.dot_dimension_numbers<[1], [0], [0], [1], [0, 0, 1, 1], [], []>} : vector<4x4xbf16>, vector<4x256xbf16>, vector<4x256xf32> -> vector<4x256xf32>
    %93 = arith.addf %88, %92 : vector<4x256xf32>
    %c0_76 = arith.constant 0 : index
    %c145 = arith.constant 145 : index
    %94 = vector.load %arg15[%c0_76, %c145] : memref<4x512xbf16, #tpu.memory_space<vmem>>, vector<4x256xbf16>
    %c8 = arith.constant 8 : index
    %c0_77 = arith.constant 0 : index
    %c0_78 = arith.constant 0 : index
    %95 = vector.load %arg2[%c8, %c0_77, %c0_78] : memref<9x4x4xbf16, #tpu.memory_space<vmem>>, vector<1x4x4xbf16>
    %96 = vector.shape_cast %95 : vector<1x4x4xbf16> to vector<4x4xbf16>
    %cst_79 = arith.constant dense<0.000000e+00> : vector<4x256xf32>
    %97 = tpu.matmul %96, %94, %cst_79 {dimension_numbers = #tpu.dot_dimension_numbers<[1], [0], [0], [1], [0, 0, 1, 1], [], []>} : vector<4x4xbf16>, vector<4x256xbf16>, vector<4x256xf32> -> vector<4x256xf32>
    %98 = arith.addf %93, %97 : vector<4x256xf32>
    %99 = vector.broadcast %51 : vector<4x1xf32> to vector<4x256xf32>
    %100 = arith.mulf %98, %99 : vector<4x256xf32>
    %101 = vector.broadcast %52 : vector<4x1xf32> to vector<4x256xf32>
    %102 = arith.addf %100, %101 : vector<4x256xf32>
    %cst_80 = arith.constant 0.000000e+00 : f32
    %103 = vector.broadcast %cst_80 : f32 to vector<4x256xf32>
    %104 = arith.cmpf oge, %102, %103 : vector<4x256xf32>
    %cst_81 = arith.constant 1.000000e-03 : f32
    %105 = vector.broadcast %cst_81 : f32 to vector<4x256xf32>
    %106 = arith.mulf %102, %105 : vector<4x256xf32>
    %107 = arith.select %104, %102, %106 : vector<4x256xi1>, vector<4x256xf32>
    %108 = arith.truncf %107 : vector<4x256xf32> to vector<4x256xbf16>
    %c0_82 = arith.constant 0 : index
    %c128_83 = arith.constant 128 : index
    %109 = vector.load %arg17[%c0_82, %c128_83] : memref<4x512xbf16, #tpu.memory_space<vmem>>, vector<4x256xbf16>
    tpu.vector_store %arg17[%c0_82, %c128_83], %108 {strides = array<i32>} : memref<4x512xbf16, #tpu.memory_space<vmem>>, vector<4x256xbf16>,
    %c0_i32_84 = arith.constant 0 : i32
    %110 = arith.sitofp %c0_i32_84 : i32 to bf16
    %111 = vector.shape_cast %18 : vector<1x256xi1> to vector<1x256xi1>
    %112 = vector.broadcast %111 : vector<1x256xi1> to vector<4x256xi1>
    %113 = vector.broadcast %110 : bf16 to vector<4x256xbf16>
    %114 = arith.select %112, %108, %113 : vector<4x256xi1>, vector<4x256xbf16>
    %c0_85 = arith.constant 0 : index
    %c128_86 = arith.constant 128 : index
    %115 = vector.load %arg16[%c0_85, %c128_86] : memref<4x512xbf16, #tpu.memory_space<vmem>>, vector<4x256xbf16>
    tpu.vector_store %arg16[%c0_85, %c128_86], %114 {strides = array<i32>} : memref<4x512xbf16, #tpu.memory_space<vmem>>, vector<4x256xbf16>,
    %c0_i32_87 = arith.constant 0 : i32
    %116 = arith.sitofp %c0_i32_87 : i32 to bf16
    %117 = vector.shape_cast %20 : vector<1x256xi1> to vector<1x256xi1>
    %118 = vector.broadcast %117 : vector<1x256xi1> to vector<4x256xi1>
    %119 = vector.broadcast %116 : bf16 to vector<4x256xbf16>
    %120 = arith.select %118, %108, %119 : vector<4x256xi1>, vector<4x256xbf16>
    %c0_88 = arith.constant 0 : index
    %c128_89 = arith.constant 128 : index
    %121 = vector.load %arg18[%c0_88, %c128_89] : memref<4x512xbf16, #tpu.memory_space<vmem>>, vector<4x256xbf16>
    tpu.vector_store %arg18[%c0_88, %c128_89], %120 {strides = array<i32>} : memref<4x512xbf16, #tpu.memory_space<vmem>>, vector<4x256xbf16>,
    %c0_90 = arith.constant 0 : index
    %c0_91 = arith.constant 0 : index
    %122 = vector.load %arg6[%c0_90, %c0_91] : memref<4x1xf32, #tpu.memory_space<vmem>>, vector<4x1xf32>
    %c0_92 = arith.constant 0 : index
    %c0_93 = arith.constant 0 : index
    %123 = vector.load %arg7[%c0_92, %c0_93] : memref<4x1xf32, #tpu.memory_space<vmem>>, vector<4x1xf32>
    %cst_94 = arith.constant 0.000000e+00 : f32
    %124 = vector.broadcast %cst_94 : f32 to vector<4x1xf32>
    %c0_95 = arith.constant 0 : index
    %c0_96 = arith.constant 0 : index
    %125 = vector.load %arg20[%c0_95, %c0_96] : memref<4x1xf32, #tpu.memory_space<vmem>>, vector<4x1xf32>
    tpu.vector_store %arg20[%c0_95, %c0_96], %124 {strides = array<i32>} : memref<4x1xf32, #tpu.memory_space<vmem>>, vector<4x1xf32>,
    %cst_97 = arith.constant 0.000000e+00 : f32
    %126 = vector.broadcast %cst_97 : f32 to vector<4x256xf32>
    %c0_98 = arith.constant 0 : index
    %c111_99 = arith.constant 111 : index
    %127 = vector.load %arg16[%c0_98, %c111_99] : memref<4x512xbf16, #tpu.memory_space<vmem>>, vector<4x256xbf16>
    %c0_100 = arith.constant 0 : index
    %c0_101 = arith.constant 0 : index
    %c0_102 = arith.constant 0 : index
    %128 = vector.load %arg3[%c0_100, %c0_101, %c0_102] : memref<9x4x4xbf16, #tpu.memory_space<vmem>>, vector<1x4x4xbf16>
    %129 = vector.shape_cast %128 : vector<1x4x4xbf16> to vector<4x4xbf16>
    %cst_103 = arith.constant dense<0.000000e+00> : vector<4x256xf32>
    %130 = tpu.matmul %129, %127, %cst_103 {dimension_numbers = #tpu.dot_dimension_numbers<[1], [0], [0], [1], [0, 0, 1, 1], [], []>} : vector<4x4xbf16>, vector<4x256xbf16>, vector<4x256xf32> -> vector<4x256xf32>
    %131 = arith.addf %126, %130 : vector<4x256xf32>
    %c0_104 = arith.constant 0 : index
    %c112_105 = arith.constant 112 : index
    %132 = vector.load %arg17[%c0_104, %c112_105] : memref<4x512xbf16, #tpu.memory_space<vmem>>, vector<4x256xbf16>
    %c1_106 = arith.constant 1 : index
    %c0_107 = arith.constant 0 : index
    %c0_108 = arith.constant 0 : index
    %133 = vector.load %arg3[%c1_106, %c0_107, %c0_108] : memref<9x4x4xbf16, #tpu.memory_space<vmem>>, vector<1x4x4xbf16>
    %134 = vector.shape_cast %133 : vector<1x4x4xbf16> to vector<4x4xbf16>
    %cst_109 = arith.constant dense<0.000000e+00> : vector<4x256xf32>
    %135 = tpu.matmul %134, %132, %cst_109 {dimension_numbers = #tpu.dot_dimension_numbers<[1], [0], [0], [1], [0, 0, 1, 1], [], []>} : vector<4x4xbf16>, vector<4x256xbf16>, vector<4x256xf32> -> vector<4x256xf32>
    %136 = arith.addf %131, %135 : vector<4x256xf32>
    %c0_110 = arith.constant 0 : index
    %c113_111 = arith.constant 113 : index
    %137 = vector.load %arg18[%c0_110, %c113_111] : memref<4x512xbf16, #tpu.memory_space<vmem>>, vector<4x256xbf16>
    %c2_112 = arith.constant 2 : index
    %c0_113 = arith.constant 0 : index
    %c0_114 = arith.constant 0 : index
    %138 = vector.load %arg3[%c2_112, %c0_113, %c0_114] : memref<9x4x4xbf16, #tpu.memory_space<vmem>>, vector<1x4x4xbf16>
    %139 = vector.shape_cast %138 : vector<1x4x4xbf16> to vector<4x4xbf16>
    %cst_115 = arith.constant dense<0.000000e+00> : vector<4x256xf32>
    %140 = tpu.matmul %139, %137, %cst_115 {dimension_numbers = #tpu.dot_dimension_numbers<[1], [0], [0], [1], [0, 0, 1, 1], [], []>} : vector<4x4xbf16>, vector<4x256xbf16>, vector<4x256xf32> -> vector<4x256xf32>
    %141 = arith.addf %136, %140 : vector<4x256xf32>
    %c0_116 = arith.constant 0 : index
    %c127_117 = arith.constant 127 : index
    %142 = vector.load %arg16[%c0_116, %c127_117] : memref<4x512xbf16, #tpu.memory_space<vmem>>, vector<4x256xbf16>
    %c3_118 = arith.constant 3 : index
    %c0_119 = arith.constant 0 : index
    %c0_120 = arith.constant 0 : index
    %143 = vector.load %arg3[%c3_118, %c0_119, %c0_120] : memref<9x4x4xbf16, #tpu.memory_space<vmem>>, vector<1x4x4xbf16>
    %144 = vector.shape_cast %143 : vector<1x4x4xbf16> to vector<4x4xbf16>
    %cst_121 = arith.constant dense<0.000000e+00> : vector<4x256xf32>
    %145 = tpu.matmul %144, %142, %cst_121 {dimension_numbers = #tpu.dot_dimension_numbers<[1], [0], [0], [1], [0, 0, 1, 1], [], []>} : vector<4x4xbf16>, vector<4x256xbf16>, vector<4x256xf32> -> vector<4x256xf32>
    %146 = arith.addf %141, %145 : vector<4x256xf32>
    %c0_122 = arith.constant 0 : index
    %c128_123 = arith.constant 128 : index
    %147 = vector.load %arg17[%c0_122, %c128_123] : memref<4x512xbf16, #tpu.memory_space<vmem>>, vector<4x256xbf16>
    %c4_124 = arith.constant 4 : index
    %c0_125 = arith.constant 0 : index
    %c0_126 = arith.constant 0 : index
    %148 = vector.load %arg3[%c4_124, %c0_125, %c0_126] : memref<9x4x4xbf16, #tpu.memory_space<vmem>>, vector<1x4x4xbf16>
    %149 = vector.shape_cast %148 : vector<1x4x4xbf16> to vector<4x4xbf16>
    %cst_127 = arith.constant dense<0.000000e+00> : vector<4x256xf32>
    %150 = tpu.matmul %149, %147, %cst_127 {dimension_numbers = #tpu.dot_dimension_numbers<[1], [0], [0], [1], [0, 0, 1, 1], [], []>} : vector<4x4xbf16>, vector<4x256xbf16>, vector<4x256xf32> -> vector<4x256xf32>
    %151 = arith.addf %146, %150 : vector<4x256xf32>
    %c0_128 = arith.constant 0 : index
    %c129_129 = arith.constant 129 : index
    %152 = vector.load %arg18[%c0_128, %c129_129] : memref<4x512xbf16, #tpu.memory_space<vmem>>, vector<4x256xbf16>
    %c5_130 = arith.constant 5 : index
    %c0_131 = arith.constant 0 : index
    %c0_132 = arith.constant 0 : index
    %153 = vector.load %arg3[%c5_130, %c0_131, %c0_132] : memref<9x4x4xbf16, #tpu.memory_space<vmem>>, vector<1x4x4xbf16>
    %154 = vector.shape_cast %153 : vector<1x4x4xbf16> to vector<4x4xbf16>
    %cst_133 = arith.constant dense<0.000000e+00> : vector<4x256xf32>
    %155 = tpu.matmul %154, %152, %cst_133 {dimension_numbers = #tpu.dot_dimension_numbers<[1], [0], [0], [1], [0, 0, 1, 1], [], []>} : vector<4x4xbf16>, vector<4x256xbf16>, vector<4x256xf32> -> vector<4x256xf32>
    %156 = arith.addf %151, %155 : vector<4x256xf32>
    %c0_134 = arith.constant 0 : index
    %c143_135 = arith.constant 143 : index
    %157 = vector.load %arg16[%c0_134, %c143_135] : memref<4x512xbf16, #tpu.memory_space<vmem>>, vector<4x256xbf16>
    %c6_136 = arith.constant 6 : index
    %c0_137 = arith.constant 0 : index
    %c0_138 = arith.constant 0 : index
    %158 = vector.load %arg3[%c6_136, %c0_137, %c0_138] : memref<9x4x4xbf16, #tpu.memory_space<vmem>>, vector<1x4x4xbf16>
    %159 = vector.shape_cast %158 : vector<1x4x4xbf16> to vector<4x4xbf16>
    %cst_139 = arith.constant dense<0.000000e+00> : vector<4x256xf32>
    %160 = tpu.matmul %159, %157, %cst_139 {dimension_numbers = #tpu.dot_dimension_numbers<[1], [0], [0], [1], [0, 0, 1, 1], [], []>} : vector<4x4xbf16>, vector<4x256xbf16>, vector<4x256xf32> -> vector<4x256xf32>
    %161 = arith.addf %156, %160 : vector<4x256xf32>
    %c0_140 = arith.constant 0 : index
    %c144_141 = arith.constant 144 : index
    %162 = vector.load %arg17[%c0_140, %c144_141] : memref<4x512xbf16, #tpu.memory_space<vmem>>, vector<4x256xbf16>
    %c7_142 = arith.constant 7 : index
    %c0_143 = arith.constant 0 : index
    %c0_144 = arith.constant 0 : index
    %163 = vector.load %arg3[%c7_142, %c0_143, %c0_144] : memref<9x4x4xbf16, #tpu.memory_space<vmem>>, vector<1x4x4xbf16>
    %164 = vector.shape_cast %163 : vector<1x4x4xbf16> to vector<4x4xbf16>
    %cst_145 = arith.constant dense<0.000000e+00> : vector<4x256xf32>
    %165 = tpu.matmul %164, %162, %cst_145 {dimension_numbers = #tpu.dot_dimension_numbers<[1], [0], [0], [1], [0, 0, 1, 1], [], []>} : vector<4x4xbf16>, vector<4x256xbf16>, vector<4x256xf32> -> vector<4x256xf32>
    %166 = arith.addf %161, %165 : vector<4x256xf32>
    %c0_146 = arith.constant 0 : index
    %c145_147 = arith.constant 145 : index
    %167 = vector.load %arg18[%c0_146, %c145_147] : memref<4x512xbf16, #tpu.memory_space<vmem>>, vector<4x256xbf16>
    %c8_148 = arith.constant 8 : index
    %c0_149 = arith.constant 0 : index
    %c0_150 = arith.constant 0 : index
    %168 = vector.load %arg3[%c8_148, %c0_149, %c0_150] : memref<9x4x4xbf16, #tpu.memory_space<vmem>>, vector<1x4x4xbf16>
    %169 = vector.shape_cast %168 : vector<1x4x4xbf16> to vector<4x4xbf16>
    %cst_151 = arith.constant dense<0.000000e+00> : vector<4x256xf32>
    %170 = tpu.matmul %169, %167, %cst_151 {dimension_numbers = #tpu.dot_dimension_numbers<[1], [0], [0], [1], [0, 0, 1, 1], [], []>} : vector<4x4xbf16>, vector<4x256xbf16>, vector<4x256xf32> -> vector<4x256xf32>
    %171 = arith.addf %166, %170 : vector<4x256xf32>
    %172 = vector.broadcast %122 : vector<4x1xf32> to vector<4x256xf32>
    %173 = arith.mulf %171, %172 : vector<4x256xf32>
    %174 = vector.broadcast %123 : vector<4x1xf32> to vector<4x256xf32>
    %175 = arith.addf %173, %174 : vector<4x256xf32>
    %c0_152 = arith.constant 0 : index
    %c0_153 = arith.constant 0 : index
    %176 = vector.load %arg19[%c0_152, %c0_153] : memref<4x256xf32, #tpu.memory_space<vmem>>, vector<4x256xf32>
    tpu.vector_store %arg19[%c0_152, %c0_153], %175 {strides = array<i32>} : memref<4x256xf32, #tpu.memory_space<vmem>>, vector<4x256xf32>,
    %c0_154 = arith.constant 0 : index
    %c0_155 = arith.constant 0 : index
    %177 = vector.load %arg20[%c0_154, %c0_155] : memref<4x1xf32, #tpu.memory_space<vmem>>, vector<4x1xf32>
    %cst_156 = arith.constant dense<0.000000e+00> : vector<4xf32>
    %178 = vector.multi_reduction <add>, %175, %cst_156 [1] : vector<4x256xf32> to vector<4xf32>
    %179 = vector.shape_cast %178 : vector<4xf32> to vector<4x1xf32>
    %180 = arith.addf %177, %179 : vector<4x1xf32>
    %c0_157 = arith.constant 0 : index
    %c0_158 = arith.constant 0 : index
    %181 = vector.load %arg20[%c0_157, %c0_158] : memref<4x1xf32, #tpu.memory_space<vmem>>, vector<4x1xf32>
    tpu.vector_store %arg20[%c0_157, %c0_158], %180 {strides = array<i32>} : memref<4x1xf32, #tpu.memory_space<vmem>>, vector<4x1xf32>,
    %c0_159 = arith.constant 0 : index
    %c0_160 = arith.constant 0 : index
    %182 = vector.load %arg20[%c0_159, %c0_160] : memref<4x1xf32, #tpu.memory_space<vmem>>, vector<4x1xf32>
    %cst_161 = arith.constant 3.906250e-03 : f32
    %183 = vector.broadcast %cst_161 : f32 to vector<4x1xf32>
    %184 = arith.mulf %182, %183 : vector<4x1xf32>
    %c0_162 = arith.constant 0 : index
    %c0_163 = arith.constant 0 : index
    %185 = vector.load %arg8[%c0_162, %c0_163] : memref<64x4xf32, #tpu.memory_space<vmem>>, vector<64x4xf32>
    %cst_164 = arith.constant dense<0.000000e+00> : vector<64x1xf32>
    %186 = tpu.matmul %185, %184, %cst_164 {dimension_numbers = #tpu.dot_dimension_numbers<[1], [0], [0], [1], [0, 0, 1, 1], [], []>} : vector<64x4xf32>, vector<4x1xf32>, vector<64x1xf32> -> vector<64x1xf32>
    %c0_165 = arith.constant 0 : index
    %c0_166 = arith.constant 0 : index
    %187 = vector.load %arg9[%c0_165, %c0_166] : memref<64x1xf32, #tpu.memory_space<vmem>>, vector<64x1xf32>
    %188 = arith.addf %186, %187 : vector<64x1xf32>
    %cst_167 = arith.constant 0.000000e+00 : f32
    %189 = vector.broadcast %cst_167 : f32 to vector<64x1xf32>
    %190 = arith.maximumf %188, %189 : vector<64x1xf32>
    %c0_168 = arith.constant 0 : index
    %c0_169 = arith.constant 0 : index
    %191 = vector.load %arg10[%c0_168, %c0_169] : memref<4x64xf32, #tpu.memory_space<vmem>>, vector<4x64xf32>
    %cst_170 = arith.constant dense<0.000000e+00> : vector<4x1xf32>
    %192 = tpu.matmul %191, %190, %cst_170 {dimension_numbers = #tpu.dot_dimension_numbers<[1], [0], [0], [1], [0, 0, 1, 1], [], []>} : vector<4x64xf32>, vector<64x1xf32>, vector<4x1xf32> -> vector<4x1xf32>
    %c0_171 = arith.constant 0 : index
    %c0_172 = arith.constant 0 : index
    %193 = vector.load %arg11[%c0_171, %c0_172] : memref<4x1xf32, #tpu.memory_space<vmem>>, vector<4x1xf32>
    %194 = arith.addf %192, %193 : vector<4x1xf32>
    %195 = arith.negf %194 : vector<4x1xf32>
    %196 = math.exp %195 : vector<4x1xf32>
    %cst_173 = arith.constant 1.000000e+00 : f32
    %197 = vector.broadcast %cst_173 : f32 to vector<4x1xf32>
    %198 = arith.addf %197, %196 : vector<4x1xf32>
    %199 = arith.divf %197, %198 : vector<4x1xf32>
    %c0_174 = arith.constant 0 : index
    %c0_175 = arith.constant 0 : index
    %c0_176 = arith.constant 0 : index
    %200 = vector.load %arg1[%c0_174, %c0_175, %c0_176] : memref<1x4x256xf32, #tpu.memory_space<vmem>>, vector<1x4x256xf32>
    %201 = vector.shape_cast %200 : vector<1x4x256xf32> to vector<4x256xf32>
    %c0_177 = arith.constant 0 : index
    %c0_178 = arith.constant 0 : index
    %202 = vector.load %arg19[%c0_177, %c0_178] : memref<4x256xf32, #tpu.memory_space<vmem>>, vector<4x256xf32>
    %203 = vector.broadcast %199 : vector<4x1xf32> to vector<4x256xf32>
    %204 = arith.mulf %202, %203 : vector<4x256xf32>
    %205 = arith.addf %204, %201 : vector<4x256xf32>
    %cst_179 = arith.constant 0.000000e+00 : f32
    %206 = vector.broadcast %cst_179 : f32 to vector<4x256xf32>
    %207 = arith.maximumf %205, %206 : vector<4x256xf32>
    %c0_180 = arith.constant 0 : index
    %c0_181 = arith.constant 0 : index
    %c0_182 = arith.constant 0 : index
    %208 = vector.load %arg12[%c0_180, %c0_181, %c0_182] : memref<1x4x256xf32, #tpu.memory_space<vmem>>, vector<1x4x256xf32>
    %209 = vector.shape_cast %208 : vector<1x4x256xf32> to vector<4x256xf32>
    %210 = vector.shape_cast %207 : vector<4x256xf32> to vector<1x4x256xf32>
    tpu.vector_store %arg12[%c0_180, %c0_181, %c0_182], %210 {strides = array<i32>} : memref<1x4x256xf32, #tpu.memory_space<vmem>>, vector<1x4x256xf32>,
    return
  }
  func.func @transform_0(%arg0: i32) -> (i32, i32, i32) {
    %c0_i32 = arith.constant 0 : i32
    %c0_i32_0 = arith.constant 0 : i32
    %c0_i32_1 = arith.constant 0 : i32
    return %arg0, %c0_i32, %c0_i32_0 : i32, i32, i32
  }
  func.func @transform_1(%arg0: i32) -> (i32, i32, i32) {
    %c0_i32 = arith.constant 0 : i32
    %c0_i32_0 = arith.constant 0 : i32
    %c0_i32_1 = arith.constant 0 : i32
    %c0_i32_2 = arith.constant 0 : i32
    return %c0_i32, %c0_i32_0, %c0_i32_1 : i32, i32, i32
  }
  func.func @transform_2(%arg0: i32) -> (i32, i32, i32) {
    %c0_i32 = arith.constant 0 : i32
    %c0_i32_0 = arith.constant 0 : i32
    %c0_i32_1 = arith.constant 0 : i32
    %c0_i32_2 = arith.constant 0 : i32
    return %c0_i32, %c0_i32_0, %c0_i32_1 : i32, i32, i32
  }
  func.func @transform_3(%arg0: i32) -> (i32, i32) {
    %c0_i32 = arith.constant 0 : i32
    %c0_i32_0 = arith.constant 0 : i32
    %c0_i32_1 = arith.constant 0 : i32
    return %c0_i32, %c0_i32_0 : i32, i32
  }
  func.func @transform_4(%arg0: i32) -> (i32, i32) {
    %c0_i32 = arith.constant 0 : i32
    %c0_i32_0 = arith.constant 0 : i32
    %c0_i32_1 = arith.constant 0 : i32
    return %c0_i32, %c0_i32_0 : i32, i32
  }
  func.func @transform_5(%arg0: i32) -> (i32, i32) {
    %c0_i32 = arith.constant 0 : i32
    %c0_i32_0 = arith.constant 0 : i32
    %c0_i32_1 = arith.constant 0 : i32
    return %c0_i32, %c0_i32_0 : i32, i32
  }
  func.func @transform_6(%arg0: i32) -> (i32, i32) {
    %c0_i32 = arith.constant 0 : i32
    %c0_i32_0 = arith.constant 0 : i32
    %c0_i32_1 = arith.constant 0 : i32
    return %c0_i32, %c0_i32_0 : i32, i32
  }
  func.func @transform_7(%arg0: i32) -> (i32, i32) {
    %c0_i32 = arith.constant 0 : i32
    %c0_i32_0 = arith.constant 0 : i32
    %c0_i32_1 = arith.constant 0 : i32
    return %c0_i32, %c0_i32_0 : i32, i32
  }
  func.func @transform_8(%arg0: i32) -> (i32, i32) {
    %c0_i32 = arith.constant 0 : i32
    %c0_i32_0 = arith.constant 0 : i32
    %c0_i32_1 = arith.constant 0 : i32
    return %c0_i32, %c0_i32_0 : i32, i32
  }
  func.func @transform_9(%arg0: i32) -> (i32, i32) {
    %c0_i32 = arith.constant 0 : i32
    %c0_i32_0 = arith.constant 0 : i32
    %c0_i32_1 = arith.constant 0 : i32
    return %c0_i32, %c0_i32_0 : i32, i32
  }
  func.func @transform_10(%arg0: i32) -> (i32, i32) {
    %c0_i32 = arith.constant 0 : i32
    %c0_i32_0 = arith.constant 0 : i32
    %c0_i32_1 = arith.constant 0 : i32
    return %c0_i32, %c0_i32_0 : i32, i32
  }
  func.func @transform_11(%arg0: i32) -> (i32, i32, i32) {
    %c0_i32 = arith.constant 0 : i32
    %c0_i32_0 = arith.constant 0 : i32
    %c0_i32_1 = arith.constant 0 : i32
    return %arg0, %c0_i32, %c0_i32_0 : i32, i32, i32
  }
}

</mosaic_0001>

<llo_original>
// kernel: basic_block_forward.1
$region0: #{basic_block_forward.1}
  #allocation0 [shape = 'u32[]', space=smem, size = 0x4, offset = 0x4, fixed_abs, tag = 'smem constant byte address 0x4 - core index']
  #allocation1 [shape = 'u32[144,128]{1,0:T(1,128)}', space=vmem, size = 0x12000, scoped, tag = 'internal scratch']
  #allocation2 [shape = 'bf16[4,512]{1,0:T(4,128)(2,1)}', space=vmem, size = 0x1000, scoped, tag = 'scratch operand']
  #allocation3 [shape = 'bf16[4,512]{1,0:T(4,128)(2,1)}', space=vmem, size = 0x1000, scoped, tag = 'scratch operand']
  #allocation4 [shape = 'bf16[4,512]{1,0:T(4,128)(2,1)}', space=vmem, size = 0x1000, scoped, tag = 'scratch operand']
  #allocation5 [shape = 'bf16[4,512]{1,0:T(4,128)(2,1)}', space=vmem, size = 0x1000, scoped, tag = 'scratch operand']
  #allocation6 [shape = 'bf16[4,512]{1,0:T(4,128)(2,1)}', space=vmem, size = 0x1000, scoped, tag = 'scratch operand']
  #allocation7 [shape = 'bf16[4,512]{1,0:T(4,128)(2,1)}', space=vmem, size = 0x1000, scoped, tag = 'scratch operand']
  #allocation8 [shape = 'f32[4,256]{1,0:T(4,128)}', space=vmem, size = 0x1000, scoped, tag = 'scratch operand']
  #allocation9 [shape = 'f32[4,1]{1,0:T(4,128)}', space=vmem, size = 0x800, scoped, tag = 'scratch operand']
  %s0 = inlined_call_operand.vmem [shape: f32[2,4,256], index: 0, kind: input, shape index: {}]
  %s1 = inlined_call_operand.vmem [shape: bf16[9,4,4], index: 1, kind: input, shape index: {}]
  %s2 = inlined_call_operand.vmem [shape: bf16[9,4,4], index: 2, kind: input, shape index: {}]
  %s3 = inlined_call_operand.vmem [shape: f32[4,1], index: 3, kind: input, shape index: {}]
  %s4 = inlined_call_operand.vmem [shape: f32[4,1], index: 4, kind: input, shape index: {}]
  %s5 = inlined_call_operand.vmem [shape: f32[4,1], index: 5, kind: input, shape index: {}]
  %s6 = inlined_call_operand.vmem [shape: f32[4,1], index: 6, kind: input, shape index: {}]
  %s7 = inlined_call_operand.vmem [shape: f32[64,4], index: 7, kind: input, shape index: {}]
  %s8 = inlined_call_operand.vmem [shape: f32[64,1], index: 8, kind: input, shape index: {}]
  %s9 = inlined_call_operand.vmem [shape: f32[4,64], index: 9, kind: input, shape index: {}]
  %s10 = inlined_call_operand.vmem [shape: f32[4,1], index: 10, kind: input, shape index: {}]
  %s11 = inlined_call_operand.vmem [shape: f32[2,4,256], index: 11, kind: output, shape index: {}]
  %s12 = sld [smem:[#allocation0]]
  $region77: #{basic_block_forward.1} parent=0
    _
  %s14 = ssub.s32 1, %s12
  %s15 = scalar_select 0, %s14, %s12
  loop: start=0, step=1, limit=4
  $region2: #{basic_block_forward.1} parent=0 // loop_pre_header
    _
  $region3: #{basic_block_forward.1} parent=0 // loop_header
    %s17 = sphi 0, %s21
    %p18 = scmp.ge.s32.totalorder %s17, 4
    %s27 = sphi 0, %s29
    %s30 = sphi 0, %s27
    %s31 = sphi 0, %s30
    %s47 = sphi 0, %s31
    %s51 = sphi 0, %s51
    %s53 = sphi 0, %s51
    %s54 = sphi 0, %s53
    %s68 = sphi 0, %s54
    %s72 = sphi 0, %s72
    %s74 = sphi 0, %s72
    %s75 = sphi 0, %s74
    %s89 = sphi 0, %s75
    %s93 = sphi 0, %s93
    %s95 = sphi 0, %s93
    %s96 = sphi 0, %s95
    %s110 = sphi 0, %s96
    %s114 = sphi 0, %s114
    %s116 = sphi 0, %s114
    %s117 = sphi 0, %s116
    %s131 = sphi 0, %s117
    %s135 = sphi 0, %s135
    %s137 = sphi 0, %s135
    %s138 = sphi 0, %s137
    %s152 = sphi 0, %s138
    %s156 = sphi 0, %s156
    %s158 = sphi 0, %s156
    %s159 = sphi 0, %s158
    %s173 = sphi 0, %s159
    %s177 = sphi 0, %s177
    %s179 = sphi 0, %s177
    %s180 = sphi 0, %s179
    %s194 = sphi 0, %s180
    %s198 = sphi 0, %s198
    %s200 = sphi 0, %s198
    %s201 = sphi 0, %s200
    %s215 = sphi 0, %s201
    %s219 = sphi 0, %s219
    %s221 = sphi 0, %s219
    %s222 = sphi 0, %s221
    %s236 = sphi 0, %s222
    %s240 = sphi 0, %s240
    %s242 = sphi 0, %s240
    %s243 = sphi 0, %s242
    %s257 = sphi 0, %s243
    %s263 = sphi 0, %s265
    %s266 = sphi 0, %s263
    %s267 = sphi 0, %s266
    %s283 = sphi 0, %s267
  $region4: #{basic_block_forward.1} parent=0 // loop_header_branch
    %20 = sbr.rel (%p18) target = $region8
  $region5: #{basic_block_forward.1} parent=0 // loop_body
    %s22 = ssub.s32 %s17, 1
    %s23 = ssub.s32 %s17, 2
    %s24 = sadd.s32 %s17, 1
    %s25 = ssub.s32 %s17, %s24
    %p26 = scmp.eq.s32.totalorder %s25, 0
    %s28 = sadd.s32 %s27, 1
    %s29 = scalar_select %p26, %s27, %s28
    %p32 = pneg %p26
    %p33 = scmp.eq.s32.totalorder %s17, 1
    %p34 = por %p32, %p33
    %p35 = scmp.ne.s32.totalorder %s27, %s30
    %p36 = scmp.eq.s32.totalorder %s17, 0
    %p37 = por %p35, %p36
    %p38 = scmp.ne.s32.totalorder %s27, %s30
    %p39 = scmp.eq.s32.totalorder %s22, 1
    %p40 = por %p38, %p39
    %p41 = scmp.ne.s32.totalorder %s30, %s31
    %p42 = scmp.eq.s32.totalorder %s22, 0
    %p43 = por %p41, %p42
    %p44 = scmp.ne.s32.totalorder %s30, %s31
    %p45 = scmp.eq.s32.totalorder %s23, 1
    %p46 = por %p44, %p45
    %p48 = scmp.ne.s32.totalorder %s31, %s47
    %p49 = scmp.eq.s32.totalorder %s23, 0
    %p50 = por %p48, %p49
    %s52 = sadd.s32 %s51, 1
    %p55 = scmp.eq.s32.totalorder %s17, 1
    %p56 = scmp.ne.s32.totalorder %s51, %s53
    %p57 = scmp.eq.s32.totalorder %s17, 0
    %p58 = por %p56, %p57
    %p59 = scmp.ne.s32.totalorder %s51, %s53
    %p60 = scmp.eq.s32.totalorder %s22, 1
    %p61 = por %p59, %p60
    %p62 = scmp.ne.s32.totalorder %s53, %s54
    %p63 = scmp.eq.s32.totalorder %s22, 0
    %p64 = por %p62, %p63
    %p65 = scmp.ne.s32.totalorder %s53, %s54
    %p66 = scmp.eq.s32.totalorder %s23, 1
    %p67 = por %p65, %p66
    %p69 = scmp.ne.s32.totalorder %s54, %s68
    %p70 = scmp.eq.s32.totalorder %s23, 0
    %p71 = por %p69, %p70
    %s73 = sadd.s32 %s72, 1
    %p76 = scmp.eq.s32.totalorder %s17, 1
    %p77 = scmp.ne.s32.totalorder %s72, %s74
    %p78 = scmp.eq.s32.totalorder %s17, 0
    %p79 = por %p77, %p78
    %p80 = scmp.ne.s32.totalorder %s72, %s74
    %p81 = scmp.eq.s32.totalorder %s22, 1
    %p82 = por %p80, %p81
    %p83 = scmp.ne.s32.totalorder %s74, %s75
    %p84 = scmp.eq.s32.totalorder %s22, 0
    %p85 = por %p83, %p84
    %p86 = scmp.ne.s32.totalorder %s74, %s75
    %p87 = scmp.eq.s32.totalorder %s23, 1
    %p88 = por %p86, %p87
    %p90 = scmp.ne.s32.totalorder %s75, %s89
    %p91 = scmp.eq.s32.totalorder %s23, 0
    %p92 = por %p90, %p91
    %s94 = sadd.s32 %s93, 1
    %p97 = scmp.eq.s32.totalorder %s17, 1
    %p98 = scmp.ne.s32.totalorder %s93, %s95
    %p99 = scmp.eq.s32.totalorder %s17, 0
    %p100 = por %p98, %p99
    %p101 = scmp.ne.s32.totalorder %s93, %s95
    %p102 = scmp.eq.s32.totalorder %s22, 1
    %p103 = por %p101, %p102
    %p104 = scmp.ne.s32.totalorder %s95, %s96
    %p105 = scmp.eq.s32.totalorder %s22, 0
    %p106 = por %p104, %p105
    %p107 = scmp.ne.s32.totalorder %s95, %s96
    %p108 = scmp.eq.s32.totalorder %s23, 1
    %p109 = por %p107, %p108
    %p111 = scmp.ne.s32.totalorder %s96, %s110
    %p112 = scmp.eq.s32.totalorder %s23, 0
    %p113 = por %p111, %p112
    %s115 = sadd.s32 %s114, 1
    %p118 = scmp.eq.s32.totalorder %s17, 1
    %p119 = scmp.ne.s32.totalorder %s114, %s116
    %p120 = scmp.eq.s32.totalorder %s17, 0
    %p121 = por %p119, %p120
    %p122 = scmp.ne.s32.totalorder %s114, %s116
    %p123 = scmp.eq.s32.totalorder %s22, 1
    %p124 = por %p122, %p123
    %p125 = scmp.ne.s32.totalorder %s116, %s117
    %p126 = scmp.eq.s32.totalorder %s22, 0
    %p127 = por %p125, %p126
    %p128 = scmp.ne.s32.totalorder %s116, %s117
    %p129 = scmp.eq.s32.totalorder %s23, 1
    %p130 = por %p128, %p129
    %p132 = scmp.ne.s32.totalorder %s117, %s131
    %p133 = scmp.eq.s32.totalorder %s23, 0
    %p134 = por %p132, %p133
    %s136 = sadd.s32 %s135, 1
    %p139 = scmp.eq.s32.totalorder %s17, 1
    %p140 = scmp.ne.s32.totalorder %s135, %s137
    %p141 = scmp.eq.s32.totalorder %s17, 0
    %p142 = por %p140, %p141
    %p143 = scmp.ne.s32.totalorder %s135, %s137
    %p144 = scmp.eq.s32.totalorder %s22, 1
    %p145 = por %p143, %p144
    %p146 = scmp.ne.s32.totalorder %s137, %s138
    %p147 = scmp.eq.s32.totalorder %s22, 0
    %p148 = por %p146, %p147
    %p149 = scmp.ne.s32.totalorder %s137, %s138
    %p150 = scmp.eq.s32.totalorder %s23, 1
    %p151 = por %p149, %p150
    %p153 = scmp.ne.s32.totalorder %s138, %s152
    %p154 = scmp.eq.s32.totalorder %s23, 0
    %p155 = por %p153, %p154
    %s157 = sadd.s32 %s156, 1
    %p160 = scmp.eq.s32.totalorder %s17, 1
    %p161 = scmp.ne.s32.totalorder %s156, %s158
    %p162 = scmp.eq.s32.totalorder %s17, 0
    %p163 = por %p161, %p162
    %p164 = scmp.ne.s32.totalorder %s156, %s158
    %p165 = scmp.eq.s32.totalorder %s22, 1
    %p166 = por %p164, %p165
    %p167 = scmp.ne.s32.totalorder %s158, %s159
    %p168 = scmp.eq.s32.totalorder %s22, 0
    %p169 = por %p167, %p168
    %p170 = scmp.ne.s32.totalorder %s158, %s159
    %p171 = scmp.eq.s32.totalorder %s23, 1
    %p172 = por %p170, %p171
    %p174 = scmp.ne.s32.totalorder %s159, %s173
    %p175 = scmp.eq.s32.totalorder %s23, 0
    %p176 = por %p174, %p175
    %s178 = sadd.s32 %s177, 1
    %p181 = scmp.eq.s32.totalorder %s17, 1
    %p182 = scmp.ne.s32.totalorder %s177, %s179
    %p183 = scmp.eq.s32.totalorder %s17, 0
    %p184 = por %p182, %p183
    %p185 = scmp.ne.s32.totalorder %s177, %s179
    %p186 = scmp.eq.s32.totalorder %s22, 1
    %p187 = por %p185, %p186
    %p188 = scmp.ne.s32.totalorder %s179, %s180
    %p189 = scmp.eq.s32.totalorder %s22, 0
    %p190 = por %p188, %p189
    %p191 = scmp.ne.s32.totalorder %s179, %s180
    %p192 = scmp.eq.s32.totalorder %s23, 1
    %p193 = por %p191, %p192
    %p195 = scmp.ne.s32.totalorder %s180, %s194
    %p196 = scmp.eq.s32.totalorder %s23, 0
    %p197 = por %p195, %p196
    %s199 = sadd.s32 %s198, 1
    %p202 = scmp.eq.s32.totalorder %s17, 1
    %p203 = scmp.ne.s32.totalorder %s198, %s200
    %p204 = scmp.eq.s32.totalorder %s17, 0
    %p205 = por %p203, %p204
    %p206 = scmp.ne.s32.totalorder %s198, %s200
    %p207 = scmp.eq.s32.totalorder %s22, 1
    %p208 = por %p206, %p207
    %p209 = scmp.ne.s32.totalorder %s200, %s201
    %p210 = scmp.eq.s32.totalorder %s22, 0
    %p211 = por %p209, %p210
    %p212 = scmp.ne.s32.totalorder %s200, %s201
    %p213 = scmp.eq.s32.totalorder %s23, 1
    %p214 = por %p212, %p213
    %p216 = scmp.ne.s32.totalorder %s201, %s215
    %p217 = scmp.eq.s32.totalorder %s23, 0
    %p218 = por %p216, %p217
    %s220 = sadd.s32 %s219, 1
    %p223 = scmp.eq.s32.totalorder %s17, 1
    %p224 = scmp.ne.s32.totalorder %s219, %s221
    %p225 = scmp.eq.s32.totalorder %s17, 0
    %p226 = por %p224, %p225
    %p227 = scmp.ne.s32.totalorder %s219, %s221
    %p228 = scmp.eq.s32.totalorder %s22, 1
    %p229 = por %p227, %p228
    %p230 = scmp.ne.s32.totalorder %s221, %s222
    %p231 = scmp.eq.s32.totalorder %s22, 0
    %p232 = por %p230, %p231
    %p233 = scmp.ne.s32.totalorder %s221, %s222
    %p234 = scmp.eq.s32.totalorder %s23, 1
    %p235 = por %p233, %p234
    %p237 = scmp.ne.s32.totalorder %s222, %s236
    %p238 = scmp.eq.s32.totalorder %s23, 0
    %p239 = por %p237, %p238
    %s241 = sadd.s32 %s240, 1
    %p244 = scmp.eq.s32.totalorder %s17, 1
    %p245 = scmp.ne.s32.totalorder %s240, %s242
    %p246 = scmp.eq.s32.totalorder %s17, 0
    %p247 = por %p245, %p246
    %p248 = scmp.ne.s32.totalorder %s240, %s242
    %p249 = scmp.eq.s32.totalorder %s22, 1
    %p250 = por %p248, %p249
    %p251 = scmp.ne.s32.totalorder %s242, %s243
    %p252 = scmp.eq.s32.totalorder %s22, 0
    %p253 = por %p251, %p252
    %p254 = scmp.ne.s32.totalorder %s242, %s243
    %p255 = scmp.eq.s32.totalorder %s23, 1
    %p256 = por %p254, %p255
    %p258 = scmp.ne.s32.totalorder %s243, %s257
    %p259 = scmp.eq.s32.totalorder %s23, 0
    %p260 = por %p258, %p259
    %s261 = ssub.s32 %s17, %s24
    %p262 = scmp.eq.s32.totalorder %s261, 0
    %s264 = sadd.s32 %s263, 1
    %s265 = scalar_select %p262, %s263, %s264
    %p268 = pneg %p262
    %p269 = scmp.eq.s32.totalorder %s17, 1
    %p270 = por %p268, %p269
    %p271 = scmp.ne.s32.totalorder %s263, %s266
    %p272 = scmp.eq.s32.totalorder %s17, 0
    %p273 = por %p271, %p272
    %p274 = scmp.ne.s32.totalorder %s263, %s266
    %p275 = scmp.eq.s32.totalorder %s22, 1
    %p276 = por %p274, %p275
    %p277 = scmp.ne.s32.totalorder %s266, %s267
    %p278 = scmp.eq.s32.totalorder %s22, 0
    %p279 = por %p277, %p278
    %p280 = scmp.ne.s32.totalorder %s266, %s267
    %p281 = scmp.eq.s32.totalorder %s23, 1
    %p282 = por %p280, %p281
    %p284 = scmp.ne.s32.totalorder %s267, %s283
    %p285 = scmp.eq.s32.totalorder %s23, 0
    %p286 = por %p284, %p285
    %p287 = scmp.le.s32.totalorder 1, %s17
    %p288 = scmp.lt.s32.totalorder %s17, 3
    %p289 = pnand %p287, %p288
    %p290 = pneg %p289
    // Predicated region
    $region9: #{basic_block_forward.1} parent=5 // pred_check
      _
    $region10: #{basic_block_forward.1} parent=5 // pred_check_branch
      %292 = sbr.rel (%p289) target = $region12
    $region11: #{basic_block_forward.1} parent=5 // pred_region
      %s293 = ssub.s32 %s17, 1
      // Predicated region
      $region13: #{basic_block_forward.1} parent=11 // pred_check
        %p294 = pneg %p64
      $region14: #{basic_block_forward.1} parent=11 // pred_check_branch
        %296 = sbr.rel (%p294) target = $region16
      $region15: #{basic_block_forward.1} parent=11 // pred_region
        _
      $region16: #{basic_block_forward.1} parent=11 // pred_fallthru
        _
      // Predicated region
      $region17: #{basic_block_forward.1} parent=11 // pred_check
        %p297 = pneg %p85
      $region18: #{basic_block_forward.1} parent=11 // pred_check_branch
        %299 = sbr.rel (%p297) target = $region20
      $region19: #{basic_block_forward.1} parent=11 // pred_region
        _
      $region20: #{basic_block_forward.1} parent=11 // pred_fallthru
        _
      // Predicated region
      $region21: #{basic_block_forward.1} parent=11 // pred_check
        %p300 = pneg %p106
      $region22: #{basic_block_forward.1} parent=11 // pred_check_branch
        %302 = sbr.rel (%p300) target = $region24
      $region23: #{basic_block_forward.1} parent=11 // pred_region
        _
      $region24: #{basic_block_forward.1} parent=11 // pred_fallthru
        _
      // Predicated region
      $region25: #{basic_block_forward.1} parent=11 // pred_check
        %p303 = pneg %p127
      $region26: #{basic_block_forward.1} parent=11 // pred_check_branch
        %305 = sbr.rel (%p303) target = $region28
      $region27: #{basic_block_forward.1} parent=11 // pred_region
        _
      $region28: #{basic_block_forward.1} parent=11 // pred_fallthru
        _
      // Predicated region
      $region29: #{basic_block_forward.1} parent=11 // pred_check
        %p306 = pneg %p148
      $region30: #{basic_block_forward.1} parent=11 // pred_check_branch
        %308 = sbr.rel (%p306) target = $region32
      $region31: #{basic_block_forward.1} parent=11 // pred_region
        _
      $region32: #{basic_block_forward.1} parent=11 // pred_fallthru
        _
      // Predicated region
      $region33: #{basic_block_forward.1} parent=11 // pred_check
        %p309 = pneg %p169
      $region34: #{basic_block_forward.1} parent=11 // pred_check_branch
        %311 = sbr.rel (%p309) target = $region36
      $region35: #{basic_block_forward.1} parent=11 // pred_region
        _
      $region36: #{basic_block_forward.1} parent=11 // pred_fallthru
        _
      // Predicated region
      $region37: #{basic_block_forward.1} parent=11 // pred_check
        %p312 = pneg %p190
      $region38: #{basic_block_forward.1} parent=11 // pred_check_branch
        %314 = sbr.rel (%p312) target = $region40
      $region39: #{basic_block_forward.1} parent=11 // pred_region
        _
      $region40: #{basic_block_forward.1} parent=11 // pred_fallthru
        _
      // Predicated region
      $region41: #{basic_block_forward.1} parent=11 // pred_check
        %p315 = pneg %p211
      $region42: #{basic_block_forward.1} parent=11 // pred_check_branch
        %317 = sbr.rel (%p315) target = $region44
      $region43: #{basic_block_forward.1} parent=11 // pred_region
        _
      $region44: #{basic_block_forward.1} parent=11 // pred_fallthru
        _
      // Predicated region
      $region45: #{basic_block_forward.1} parent=11 // pred_check
        %p318 = pneg %p232
      $region46: #{basic_block_forward.1} parent=11 // pred_check_branch
        %320 = sbr.rel (%p318) target = $region48
      $region47: #{basic_block_forward.1} parent=11 // pred_region
        _
      $region48: #{basic_block_forward.1} parent=11 // pred_fallthru
        _
      // Predicated region
      $region49: #{basic_block_forward.1} parent=11 // pred_check
        %p321 = pneg %p253
      $region50: #{basic_block_forward.1} parent=11 // pred_check_branch
        %323 = sbr.rel (%p321) target = $region52
      $region51: #{basic_block_forward.1} parent=11 // pred_region
        _
      $region52: #{basic_block_forward.1} parent=11 // pred_fallthru
        _
    $region12: #{basic_block_forward.1} parent=5 // pred_fallthru
      _
    %p324 = scmp.lt.s32.totalorder %s17, 2
    // Predicated region
    $region53: #{basic_block_forward.1} parent=5 // pred_check
      %p325 = pneg %p324
    $region54: #{basic_block_forward.1} parent=5 // pred_check_branch
      %327 = sbr.rel (%p325) target = $region56
    $region55: #{basic_block_forward.1} parent=5 // pred_region
      // Predicated region
      $region57: #{basic_block_forward.1} parent=55 // pred_check
        %p328 = pneg %p37
      $region58: #{basic_block_forward.1} parent=55 // pred_check_branch
        %330 = sbr.rel (%p328) target = $region60
      $region59: #{basic_block_forward.1} parent=55 // pred_region
        %p331 = scmp.lt.s32.totalorder %s17, 1
        %s332 = scalar_select %p331, %s17, 1
        %s333 = smul.addr %s332, 2
        %s334 = smul.addr %s333, 4
        %s335 = scalar_lea.vmem %s0, %s334
      $region60: #{basic_block_forward.1} parent=55 // pred_fallthru
        _
    $region56: #{basic_block_forward.1} parent=5 // pred_fallthru
      _
    %p336 = scmp.le.s32.totalorder 1, %s17
    %p337 = scmp.lt.s32.totalorder %s17, 3
    %p338 = pnand %p336, %p337
    %p339 = pneg %p338
    // Predicated region
    $region61: #{basic_block_forward.1} parent=5 // pred_check
      _
    $region62: #{basic_block_forward.1} parent=5 // pred_check_branch
      %341 = sbr.rel (%p338) target = $region64
    $region63: #{basic_block_forward.1} parent=5 // pred_region
      %s342 = ssub.s32 %s17, 1
      %p343 = scmp.lt.s32.totalorder %s22, 1
      %s344 = scalar_select %p343, %s22, 1
      %s345 = smul.addr %s344, 2
      %s346 = smul.addr %s345, 4
      %s347 = scalar_lea.vmem %s0, %s346
      %p348 = pneg %p43
      %p349 = pneg %p40
      %p350 = pneg %p64
      %p351 = pneg %p61
      %p352 = pneg %p85
      %p353 = pneg %p82
      %p354 = pneg %p106
      %p355 = pneg %p103
      %p356 = pneg %p127
      %p357 = pneg %p124
      %p358 = pneg %p148
      %p359 = pneg %p145
      %p360 = pneg %p169
      %p361 = pneg %p166
      %p362 = pneg %p190
      %p363 = pneg %p187
      %p364 = pneg %p211
      %p365 = pneg %p208
      %p366 = pneg %p232
      %p367 = pneg %p229
      %p368 = pneg %p253
      %p369 = pneg %p250
      %p370 = pneg %p279
      %p371 = pneg %p276
      %p372 = scmp.lt.s32.totalorder %s22, 1
      %s373 = scalar_select %p372, %s22, 1
      %s374 = smul.addr %s373, 2
      %s375 = smul.addr %s374, 4
      %s376 = scalar_lea.vmem %s11, %s375
      %p377 = scmp.lt.s32.totalorder %s22, 1
      %s378 = scalar_select %p377, %s22, 1
      %s379 = smul.addr %s378, 2
      %s380 = smul.addr %s379, 4
      %s381 = scalar_lea.vmem %s0, %s380
      %p382 = scmp.lt.s32.totalorder %s22, 1
      %s383 = scalar_select %p382, %s22, 1
      %s384 = smul.addr %s383, 2
      %s385 = smul.addr %s384, 4
      %s386 = scalar_lea.vmem %s11, %s385
      %v390 = vlaneseq
      %v391 = vand.u32 %v390, 127
      %v392 = vadd.s32 %v391, 128
      %vm393 = vcmp.lt.s32.totalorder %v391, 0
      %v394 = vsub.s32 0, %v391
      %v395 = vsel %vm393, %v394, %v391
      %v396 = vshrl.u32 %v395, 4
      %v397 = vand.u32 %v395, 15
      %v398 = vsub.s32 0, %v397
      %v399 = vsel %vm393, %v398, %v397
      %vm400 = vcmp.lt.s32.totalorder %v392, 0
      %v401 = vsub.s32 0, %v392
      %v402 = vsel %vm400, %v401, %v392
      %v403 = vshrl.u32 %v402, 4
      %v404 = vand.u32 %v402, 15
      %v405 = vsub.s32 0, %v404
      %v406 = vsel %vm400, %v405, %v404
      %vm407 = vcmp.ne.s32.totalorder %v399, 0
      %vm408 = vcmp.ne.s32.totalorder %v406, 0
      %vm409 = vcmp.lt.s32.totalorder %v399, 0
      %vm410 = vcmp.lt.s32.totalorder %v406, 0
      %vm411 = vmand %vm409, %vm407
      %vm412 = vmand %vm410, %vm408
      %v413 = vadd.s32 %v399, 16
      %v414 = vadd.s32 %v406, 16
      %v415 = vsel %vm411, %v413, %v399
      %v416 = vsel %vm412, %v414, %v406
      %vm417 = vcmp.ne.s32.totalorder %v415, 15
      %vm418 = vcmp.ne.s32.totalorder %v416, 15
      %vm419 = vcmp.ne.s32.totalorder %v415, 0
      %vm420 = vcmp.ne.s32.totalorder %v416, 0
      %421 = vst [vmem:[#allocation2] sm:$0x3] 0
      %422 = vst [vmem:[#allocation2 + $0x6] sm:$0x3] 0
      %423 = vst [vmem:[#allocation3] sm:$0x3] 0
      %424 = vst [vmem:[#allocation3 + $0x6] sm:$0x3] 0
      %425 = vst [vmem:[#allocation4] sm:$0x3] 0
      %426 = vst [vmem:[#allocation4 + $0x6] sm:$0x3] 0
      %427 = vst [vmem:[#allocation5] sm:$0x3] 0
      %428 = vst [vmem:[#allocation5 + $0x6] sm:$0x3] 0
      %429 = vst [vmem:[#allocation6] sm:$0x3] 0
      %430 = vst [vmem:[#allocation6 + $0x6] sm:$0x3] 0
      %431 = vst [vmem:[#allocation7] sm:$0x3] 0
      %432 = vst [vmem:[#allocation7 + $0x6] sm:$0x3] 0
      %v433 = vld [vmem:[%s381] sm:$0xff]
      %v435 = vcombine.high %v433, %v433
      %v437 = vpack.c.bf16 %v433, %v433
      %v438 = vpack.c.bf16 %v435, %v435
      %v441 = vcombine.low %v437, %v438
      %v443 = vunpack.c.l.s4 1983009808
      %v444 = vunpack.c.0.s8 %v443
      %v445 = vlaneseq
      %v446 = vshrl.u32 %v445, 7
      %v447 = vsub.s32 %v444, %v446
      %v448 = vrot.slane %v441, %v447
      %450 = vst [vmem:[#allocation3 + $0x2] sm:$0xf] %v448
      %v451 = vsel %vm417, 1, 0
      %v452 = vsel %vm418, 1, 0
      %vm453 = vcmp.eq.s32.totalorder %v451, 1
      %vm454 = vcmp.eq.s32.totalorder %v452, 1
      %vm455 = vmpackc.low %vm454, %vm453
      %v456 = vsel %vm455, 65537, 0
      %v457 = vlaneseq
      %v458 = vshrl.u32 %v457, 7
      %v459 = vsub.s32 0, %v458
      %v460 = vrot.slane %v456, %v459
      %v461 = vlaneseq
      %v462 = vshrl.u32 %v461, 7
      %v463 = vsub.s32 4, %v462
      %v464 = vrot.slane %v456, %v463
      %vm465 = vcmp.ne.s16.totalorder %v460, 0
      %vm466 = vcmp.ne.s16.totalorder %v464, 0
      %v467 = vsel %vm465, %v437, 0
      %v468 = vsel %vm466, %v438, 0
      %v471 = vcombine.low %v467, %v468
      %v473 = vunpack.c.l.s4 1983009808
      %v474 = vunpack.c.0.s8 %v473
      %v475 = vlaneseq
      %v476 = vshrl.u32 %v475, 7
      %v477 = vsub.s32 %v474, %v476
      %v478 = vrot.slane %v471, %v477
      %480 = vst [vmem:[#allocation2 + $0x2] sm:$0xf] %v478
      %v481 = vsel %vm419, 1, 0
      %v482 = vsel %vm420, 1, 0
      %vm483 = vcmp.eq.s32.totalorder %v481, 1
      %vm484 = vcmp.eq.s32.totalorder %v482, 1
      %vm485 = vmpackc.low %vm484, %vm483
      %v486 = vsel %vm485, 65537, 0
      %v487 = vlaneseq
      %v488 = vshrl.u32 %v487, 7
      %v489 = vsub.s32 0, %v488
      %v490 = vrot.slane %v486, %v489
      %v491 = vlaneseq
      %v492 = vshrl.u32 %v491, 7
      %v493 = vsub.s32 4, %v492
      %v494 = vrot.slane %v486, %v493
      %vm495 = vcmp.ne.s16.totalorder %v490, 0
      %vm496 = vcmp.ne.s16.totalorder %v494, 0
      %v497 = vsel %vm495, %v437, 0
      %v498 = vsel %vm496, %v438, 0
      %v501 = vcombine.low %v497, %v498
      %v503 = vunpack.c.l.s4 1983009808
      %v504 = vunpack.c.0.s8 %v503
      %v505 = vlaneseq
      %v506 = vshrl.u32 %v505, 7
      %v507 = vsub.s32 %v504, %v506
      %v508 = vrot.slane %v501, %v507
      %510 = vst [vmem:[#allocation4 + $0x2] sm:$0xf] %v508
      %v511 = vld [vmem:[%s3] sm:$0xf]
      %v512 = vld [vmem:[%s4] sm:$0xf]
      %v513 = vld [vmem:[#allocation2] sm:$0x3f]
      %v514 = vld [vmem:[%s1] sm:$0x3]
      %v515 = vld [vmem:[#allocation3] sm:$0x3f]
      %s516 = scalar_lea.vmem %s1, 2
      %v517 = vld [vmem:[%s516] sm:$0x3]
      %v519 = vcombine.high %v515, %v515
      %v521 = vunpack.c.l.s4 1983009808
      %v522 = vunpack.c.0.s8 %v521
      %v523 = vlaneseq
      %v524 = vshrl.u32 %v523, 7
      %v525 = vsub.s32 %v522, %v524
      %v526 = vrot.slane %v515, %v525
      %v528 = vunpack.c.l.s4 1983009808
      %v529 = vunpack.c.0.s8 %v528
      %v530 = vlaneseq
      %v531 = vshrl.u32 %v530, 7
      %v532 = vsub.s32 %v529, %v531
      %v533 = vrot.slane %v519, %v532
      %v534 = vcombine.high %v526, %v526
      %535 = vrot.lane.b32.xlu0 %v526, 16
      %v536 = vpop.permute.xlu0 %535
      %537 = vrot.lane.b32.xlu0 %v534, 16
      %v538 = vpop.permute.xlu0 %537
      %539 = vrot.lane.b32.xlu0 %v533, 16
      %v540 = vpop.permute.xlu0 %539
      %vm541 = vcmask 130048
      %v542 = vsel %vm541, %v536, %v538
      %v543 = vsel %vm541, %v538, %v540
      %vm544 = vcmask 31744
      %v546 = vsel %vm544, %v517, 0
      %vm548 = vcmask 1041408
      %v550 = vsel %vm548, %v542, 0
      %v553 = vsel %vm548, %v543, 0
      %555 = vmatprep.subr.bf16.mxu0 %v553
      %556 = vmatpush1.bf16.msra.mxu0 %v550
      %557 = vmatprep.subr.bf16.mxu0 0
      %558 = vmatpush1.bf16.msra.mxu0 0
      %559 = vmatprep.subr.bf16.mxu0 0
      %560 = vmatpush1.bf16.msra.mxu0 0
      %561 = vmatprep.subr.bf16.mxu0 0
      %562 = vmatpush1.bf16.msra.mxu0 0
      %563 = vmatprep.subr.bf16.mxu0 0
      %564 = vmatpush1.bf16.msra.mxu0 0
      %565 = vmatprep.subr.bf16.mxu0 0
      %566 = vmatpush1.bf16.msra.mxu0 0
      %567 = vmatprep.subr.bf16.mxu0 0
      %568 = vmatpush1.bf16.msra.mxu0 0
      %569 = vmatprep.subr.bf16.mxu0 0
      %570 = vmatpush1.bf16.msra.mxu0 0
      %571 = vmatprep.subr.bf16.mxu0 0
      %572 = vmatpush1.bf16.msra.mxu0 0
      %573 = vmatprep.subr.bf16.mxu0 0
      %574 = vmatpush1.bf16.msra.mxu0 0
      %575 = vmatprep.subr.bf16.mxu0 0
      %576 = vmatpush1.bf16.msra.mxu0 0
      %577 = vmatprep.subr.bf16.mxu0 0
      %578 = vmatpush1.bf16.msra.mxu0 0
      %579 = vmatprep.subr.bf16.mxu0 0
      %580 = vmatpush1.bf16.msra.mxu0 0
      %581 = vmatprep.subr.bf16.mxu0 0
      %582 = vmatpush1.bf16.msra.mxu0 0
      %583 = vmatprep.subr.bf16.mxu0 0
      %584 = vmatpush1.bf16.msra.mxu0 0
      %585 = vmatprep.subr.bf16.mxu0 0
      %586 = vmatpush1.bf16.msra.mxu0 0
      %587 = vmatprep.mubr.bf16.mxu0 0
      %588 = vmatmul.mubr.bf16.gmra.mrb[0].mxu0 %v546
      %v589 = vpop.f32.mrb[0].mxu0
      %v590 = vadd.f32 0.0, %v589
      %v591 = vpop.f32.mrb[0].mxu0
      %v592 = vadd.f32 0.0, %v591
      %v593 = vpop.f32.mrb[0].mxu0
      %v594 = vpop.f32.mrb[0].mxu0
      %595 = vdwg.mxu0
      %v597 = vcombine.high %v513, %v513
      %v599 = vunpack.c.l.s4 1983009808
      %v600 = vunpack.c.0.s8 %v599
      %v601 = vlaneseq
      %v602 = vshrl.u32 %v601, 7
      %v603 = vsub.s32 %v600, %v602
      %v604 = vrot.slane %v513, %v603
      %v606 = vunpack.c.l.s4 1983009808
      %v607 = vunpack.c.0.s8 %v606
      %v608 = vlaneseq
      %v609 = vshrl.u32 %v608, 7
      %v610 = vsub.s32 %v607, %v609
      %v611 = vrot.slane %v597, %v610
      %v612 = vcombine.high %v604, %v604
      %613 = vrot.lane.b32.xlu0 %v604, 17
      %v614 = vpop.permute.xlu0 %613
      %615 = vrot.lane.b32.xlu0 %v612, 17
      %v616 = vpop.permute.xlu0 %615
      %617 = vrot.lane.b32.xlu0 %v611, 17
      %v618 = vpop.permute.xlu0 %617
      %vm619 = vcmask 138240
      %v620 = vsel %vm619, %v614, %v616
      %v621 = vsel %vm619, %v616, %v618
      %v623 = vsel %vm544, %v514, 0
      %v626 = vsel %vm548, %v620, 0
      %v629 = vsel %vm548, %v621, 0
      %631 = vmatprep.subr.bf16.mxu0 %v629
      %632 = vmatpush1.bf16.msra.mxu0 %v626
      %633 = vmatprep.subr.bf16.mxu0 0
      %634 = vmatpush1.bf16.msra.mxu0 0
      %635 = vmatprep.subr.bf16.mxu0 0
      %636 = vmatpush1.bf16.msra.mxu0 0
      %637 = vmatprep.subr.bf16.mxu0 0
      %638 = vmatpush1.bf16.msra.mxu0 0
      %639 = vmatprep.subr.bf16.mxu0 0
      %640 = vmatpush1.bf16.msra.mxu0 0
      %641 = vmatprep.subr.bf16.mxu0 0
      %642 = vmatpush1.bf16.msra.mxu0 0
      %643 = vmatprep.subr.bf16.mxu0 0
      %644 = vmatpush1.bf16.msra.mxu0 0
      %645 = vmatprep.subr.bf16.mxu0 0
      %646 = vmatpush1.bf16.msra.mxu0 0
      %647 = vmatprep.subr.bf16.mxu0 0
      %648 = vmatpush1.bf16.msra.mxu0 0
      %649 = vmatprep.subr.bf16.mxu0 0
      %650 = vmatpush1.bf16.msra.mxu0 0
      %651 = vmatprep.subr.bf16.mxu0 0
      %652 = vmatpush1.bf16.msra.mxu0 0
      %653 = vmatprep.subr.bf16.mxu0 0
      %654 = vmatpush1.bf16.msra.mxu0 0
      %655 = vmatprep.subr.bf16.mxu0 0
      %656 = vmatpush1.bf16.msra.mxu0 0
      %657 = vmatprep.subr.bf16.mxu0 0
      %658 = vmatpush1.bf16.msra.mxu0 0
      %659 = vmatprep.subr.bf16.mxu0 0
      %660 = vmatpush1.bf16.msra.mxu0 0
      %661 = vmatprep.subr.bf16.mxu0 0
      %662 = vmatpush1.bf16.msra.mxu0 0
      %663 = vmatprep.mubr.bf16.mxu0 0
      %664 = vmatmul.mubr.bf16.gmra.mrb[0].mxu0 %v623
      %v665 = vpop.f32.mrb[0].mxu0
      %v666 = vadd.f32 %v590, %v665
      %v667 = vpop.f32.mrb[0].mxu0
      %v668 = vadd.f32 %v592, %v667
      %v669 = vpop.f32.mrb[0].mxu0
      %v670 = vpop.f32.mrb[0].mxu0
      %671 = vdwg.mxu0
      %v672 = vld [vmem:[#allocation4] sm:$0x3f]
      %s673 = scalar_lea.vmem %s1, 4
      %v674 = vld [vmem:[%s673] sm:$0x3]
      %v676 = vcombine.high %v672, %v672
      %v678 = vunpack.c.l.s4 1983009808
      %v679 = vunpack.c.0.s8 %v678
      %v680 = vlaneseq
      %v681 = vshrl.u32 %v680, 7
      %v682 = vsub.s32 %v679, %v681
      %v683 = vrot.slane %v672, %v682
      %v685 = vunpack.c.l.s4 1983009808
      %v686 = vunpack.c.0.s8 %v685
      %v687 = vlaneseq
      %v688 = vshrl.u32 %v687, 7
      %v689 = vsub.s32 %v686, %v688
      %v690 = vrot.slane %v676, %v689
      %v691 = vcombine.high %v683, %v683
      %692 = vrot.lane.b32.xlu0 %v683, 15
      %v693 = vpop.permute.xlu0 %692
      %694 = vrot.lane.b32.xlu0 %v691, 15
      %v695 = vpop.permute.xlu0 %694
      %696 = vrot.lane.b32.xlu0 %v690, 15
      %v697 = vpop.permute.xlu0 %696
      %vm698 = vcmask 121856
      %v699 = vsel %vm698, %v693, %v695
      %v700 = vsel %vm698, %v695, %v697
      %v702 = vsel %vm544, %v674, 0
      %v705 = vsel %vm548, %v699, 0
      %v708 = vsel %vm548, %v700, 0
      %710 = vmatprep.subr.bf16.mxu0 %v708
      %711 = vmatpush1.bf16.msra.mxu0 %v705
      %712 = vmatprep.subr.bf16.mxu0 0
      %713 = vmatpush1.bf16.msra.mxu0 0
      %714 = vmatprep.subr.bf16.mxu0 0
      %715 = vmatpush1.bf16.msra.mxu0 0
      %716 = vmatprep.subr.bf16.mxu0 0
      %717 = vmatpush1.bf16.msra.mxu0 0
      %718 = vmatprep.subr.bf16.mxu0 0
      %719 = vmatpush1.bf16.msra.mxu0 0
      %720 = vmatprep.subr.bf16.mxu0 0
      %721 = vmatpush1.bf16.msra.mxu0 0
      %722 = vmatprep.subr.bf16.mxu0 0
      %723 = vmatpush1.bf16.msra.mxu0 0
      %724 = vmatprep.subr.bf16.mxu0 0
      %725 = vmatpush1.bf16.msra.mxu0 0
      %726 = vmatprep.subr.bf16.mxu0 0
      %727 = vmatpush1.bf16.msra.mxu0 0
      %728 = vmatprep.subr.bf16.mxu0 0
      %729 = vmatpush1.bf16.msra.mxu0 0
      %730 = vmatprep.subr.bf16.mxu0 0
      %731 = vmatpush1.bf16.msra.mxu0 0
      %732 = vmatprep.subr.bf16.mxu0 0
      %733 = vmatpush1.bf16.msra.mxu0 0
      %734 = vmatprep.subr.bf16.mxu0 0
      %735 = vmatpush1.bf16.msra.mxu0 0
      %736 = vmatprep.subr.bf16.mxu0 0
      %737 = vmatpush1.bf16.msra.mxu0 0
      %738 = vmatprep.subr.bf16.mxu0 0
      %739 = vmatpush1.bf16.msra.mxu0 0
      %740 = vmatprep.subr.bf16.mxu0 0
      %741 = vmatpush1.bf16.msra.mxu0 0
      %742 = vmatprep.mubr.bf16.mxu0 0
      %743 = vmatmul.mubr.bf16.gmra.mrb[0].mxu0 %v702
      %v744 = vpop.f32.mrb[0].mxu0
      %v745 = vadd.f32 0.0, %v744
      %v746 = vpop.f32.mrb[0].mxu0
      %v747 = vadd.f32 0.0, %v746
      %v748 = vpop.f32.mrb[0].mxu0
      %v749 = vpop.f32.mrb[0].mxu0
      %750 = vdwg.mxu0
      %v751 = vadd.f32 %v666, %v745
      %v752 = vadd.f32 %v668, %v747
      %v753 = vld [vmem:[#allocation2] sm:$0x3f]
      %s754 = scalar_lea.vmem %s1, 6
      %v755 = vld [vmem:[%s754] sm:$0x3]
      %v757 = vcombine.high %v753, %v753
      %v759 = vunpack.c.l.s4 1983009808
      %v760 = vunpack.c.0.s8 %v759
      %v761 = vlaneseq
      %v762 = vshrl.u32 %v761, 7
      %v763 = vsub.s32 %v760, %v762
      %v764 = vrot.slane %v753, %v763
      %v766 = vunpack.c.l.s4 1983009808
      %v767 = vunpack.c.0.s8 %v766
      %v768 = vlaneseq
      %v769 = vshrl.u32 %v768, 7
      %v770 = vsub.s32 %v767, %v769
      %v771 = vrot.slane %v757, %v770
      %v772 = vcombine.high %v764, %v764
      %773 = vrot.lane.b32.xlu0 %v764, 1
      %v774 = vpop.permute.xlu0 %773
      %775 = vrot.lane.b32.xlu0 %v772, 1
      %v776 = vpop.permute.xlu0 %775
      %777 = vrot.lane.b32.xlu0 %v771, 1
      %v778 = vpop.permute.xlu0 %777
      %vm779 = vcmask 7168
      %v780 = vsel %vm779, %v774, %v776
      %v781 = vsel %vm779, %v776, %v778
      %v783 = vsel %vm544, %v755, 0
      %v786 = vsel %vm548, %v780, 0
      %v789 = vsel %vm548, %v781, 0
      %791 = vmatprep.subr.bf16.mxu0 %v789
      %792 = vmatpush1.bf16.msra.mxu0 %v786
      %793 = vmatprep.subr.bf16.mxu0 0
      %794 = vmatpush1.bf16.msra.mxu0 0
      %795 = vmatprep.subr.bf16.mxu0 0
      %796 = vmatpush1.bf16.msra.mxu0 0
      %797 = vmatprep.subr.bf16.mxu0 0
      %798 = vmatpush1.bf16.msra.mxu0 0
      %799 = vmatprep.subr.bf16.mxu0 0
      %800 = vmatpush1.bf16.msra.mxu0 0
      %801 = vmatprep.subr.bf16.mxu0 0
      %802 = vmatpush1.bf16.msra.mxu0 0
      %803 = vmatprep.subr.bf16.mxu0 0
      %804 = vmatpush1.bf16.msra.mxu0 0
      %805 = vmatprep.subr.bf16.mxu0 0
      %806 = vmatpush1.bf16.msra.mxu0 0
      %807 = vmatprep.subr.bf16.mxu0 0
      %808 = vmatpush1.bf16.msra.mxu0 0
      %809 = vmatprep.subr.bf16.mxu0 0
      %810 = vmatpush1.bf16.msra.mxu0 0
      %811 = vmatprep.subr.bf16.mxu0 0
      %812 = vmatpush1.bf16.msra.mxu0 0
      %813 = vmatprep.subr.bf16.mxu0 0
      %814 = vmatpush1.bf16.msra.mxu0 0
      %815 = vmatprep.subr.bf16.mxu0 0
      %816 = vmatpush1.bf16.msra.mxu0 0
      %817 = vmatprep.subr.bf16.mxu0 0
      %818 = vmatpush1.bf16.msra.mxu0 0
      %819 = vmatprep.subr.bf16.mxu0 0
      %820 = vmatpush1.bf16.msra.mxu0 0
      %821 = vmatprep.subr.bf16.mxu0 0
      %822 = vmatpush1.bf16.msra.mxu0 0
      %823 = vmatprep.mubr.bf16.mxu0 0
      %824 = vmatmul.mubr.bf16.gmra.mrb[0].mxu0 %v783
      %v825 = vpop.f32.mrb[0].mxu0
      %v826 = vadd.f32 0.0, %v825
      %v827 = vpop.f32.mrb[0].mxu0
      %v828 = vadd.f32 0.0, %v827
      %v829 = vpop.f32.mrb[0].mxu0
      %v830 = vpop.f32.mrb[0].mxu0
      %831 = vdwg.mxu0
      %v832 = vadd.f32 %v751, %v826
      %v833 = vadd.f32 %v752, %v828
      %v834 = vld [vmem:[#allocation3 + $0x2] sm:$0xf]
      %s835 = scalar_lea.vmem %s1, 8
      %v836 = vld [vmem:[%s835] sm:$0x3]
      %v839 = vunpack.c.l.s4 1983009808
      %v840 = vunpack.c.0.s8 %v839
      %v841 = vlaneseq
      %v842 = vshrl.u32 %v841, 7
      %v843 = vsub.s32 %v840, %v842
      %v844 = vrot.slane %v834, %v843
      %v845 = vcombine.high %v844, %v844
      %v847 = vsel %vm544, %v836, 0
      %v850 = vsel %vm548, %v844, 0
      %v853 = vsel %vm548, %v845, 0
      %855 = vmatprep.subr.bf16.mxu0 %v853
      %856 = vmatpush1.bf16.msra.mxu0 %v850
      %857 = vmatprep.subr.bf16.mxu0 0
      %858 = vmatpush1.bf16.msra.mxu0 0
      %859 = vmatprep.subr.bf16.mxu0 0
      %860 = vmatpush1.bf16.msra.mxu0 0
      %861 = vmatprep.subr.bf16.mxu0 0
      %862 = vmatpush1.bf16.msra.mxu0 0
      %863 = vmatprep.subr.bf16.mxu0 0
      %864 = vmatpush1.bf16.msra.mxu0 0
      %865 = vmatprep.subr.bf16.mxu0 0
      %866 = vmatpush1.bf16.msra.mxu0 0
      %867 = vmatprep.subr.bf16.mxu0 0
      %868 = vmatpush1.bf16.msra.mxu0 0
      %869 = vmatprep.subr.bf16.mxu0 0
      %870 = vmatpush1.bf16.msra.mxu0 0
      %871 = vmatprep.subr.bf16.mxu0 0
      %872 = vmatpush1.bf16.msra.mxu0 0
      %873 = vmatprep.subr.bf16.mxu0 0
      %874 = vmatpush1.bf16.msra.mxu0 0
      %875 = vmatprep.subr.bf16.mxu0 0
      %876 = vmatpush1.bf16.msra.mxu0 0
      %877 = vmatprep.subr.bf16.mxu0 0
      %878 = vmatpush1.bf16.msra.mxu0 0
      %879 = vmatprep.subr.bf16.mxu0 0
      %880 = vmatpush1.bf16.msra.mxu0 0
      %881 = vmatprep.subr.bf16.mxu0 0
      %882 = vmatpush1.bf16.msra.mxu0 0
      %883 = vmatprep.subr.bf16.mxu0 0
      %884 = vmatpush1.bf16.msra.mxu0 0
      %885 = vmatprep.subr.bf16.mxu0 0
      %886 = vmatpush1.bf16.msra.mxu0 0
      %887 = vmatprep.mubr.bf16.mxu0 0
      %888 = vmatmul.mubr.bf16.gmra.mrb[0].mxu0 %v847
      %v889 = vpop.f32.mrb[0].mxu0
      %v890 = vadd.f32 0.0, %v889
      %v891 = vpop.f32.mrb[0].mxu0
      %v892 = vadd.f32 0.0, %v891
      %v893 = vpop.f32.mrb[0].mxu0
      %v894 = vpop.f32.mrb[0].mxu0
      %895 = vdwg.mxu0
      %v896 = vadd.f32 %v832, %v890
      %v897 = vadd.f32 %v833, %v892
      %v898 = vld [vmem:[#allocation4 + $0x2] sm:$0x3f]
      %s899 = scalar_lea.vmem %s1, 10
      %v900 = vld [vmem:[%s899] sm:$0x3]
      %v902 = vcombine.high %v898, %v898
      %v904 = vunpack.c.l.s4 1983009808
      %v905 = vunpack.c.0.s8 %v904
      %v906 = vlaneseq
      %v907 = vshrl.u32 %v906, 7
      %v908 = vsub.s32 %v905, %v907
      %v909 = vrot.slane %v898, %v908
      %v911 = vunpack.c.l.s4 1983009808
      %v912 = vunpack.c.0.s8 %v911
      %v913 = vlaneseq
      %v914 = vshrl.u32 %v913, 7
      %v915 = vsub.s32 %v912, %v914
      %v916 = vrot.slane %v902, %v915
      %v917 = vcombine.high %v909, %v909
      %918 = vrot.lane.b32.xlu0 %v909, 127
      %v919 = vpop.permute.xlu0 %918
      %920 = vrot.lane.b32.xlu0 %v917, 127
      %v921 = vpop.permute.xlu0 %920
      %922 = vrot.lane.b32.xlu0 %v916, 127
      %v923 = vpop.permute.xlu0 %922
      %vm924 = vcmask 1039360
      %v925 = vsel %vm924, %v919, %v921
      %v926 = vsel %vm924, %v921, %v923
      %v928 = vsel %vm544, %v900, 0
      %v931 = vsel %vm548, %v925, 0
      %v934 = vsel %vm548, %v926, 0
      %936 = vmatprep.subr.bf16.mxu0 %v934
      %937 = vmatpush1.bf16.msra.mxu0 %v931
      %938 = vmatprep.subr.bf16.mxu0 0
      %939 = vmatpush1.bf16.msra.mxu0 0
      %940 = vmatprep.subr.bf16.mxu0 0
      %941 = vmatpush1.bf16.msra.mxu0 0
      %942 = vmatprep.subr.bf16.mxu0 0
      %943 = vmatpush1.bf16.msra.mxu0 0
      %944 = vmatprep.subr.bf16.mxu0 0
      %945 = vmatpush1.bf16.msra.mxu0 0
      %946 = vmatprep.subr.bf16.mxu0 0
      %947 = vmatpush1.bf16.msra.mxu0 0
      %948 = vmatprep.subr.bf16.mxu0 0
      %949 = vmatpush1.bf16.msra.mxu0 0
      %950 = vmatprep.subr.bf16.mxu0 0
      %951 = vmatpush1.bf16.msra.mxu0 0
      %952 = vmatprep.subr.bf16.mxu0 0
      %953 = vmatpush1.bf16.msra.mxu0 0
      %954 = vmatprep.subr.bf16.mxu0 0
      %955 = vmatpush1.bf16.msra.mxu0 0
      %956 = vmatprep.subr.bf16.mxu0 0
      %957 = vmatpush1.bf16.msra.mxu0 0
      %958 = vmatprep.subr.bf16.mxu0 0
      %959 = vmatpush1.bf16.msra.mxu0 0
      %960 = vmatprep.subr.bf16.mxu0 0
      %961 = vmatpush1.bf16.msra.mxu0 0
      %962 = vmatprep.subr.bf16.mxu0 0
      %963 = vmatpush1.bf16.msra.mxu0 0
      %964 = vmatprep.subr.bf16.mxu0 0
      %965 = vmatpush1.bf16.msra.mxu0 0
      %966 = vmatprep.subr.bf16.mxu0 0
      %967 = vmatpush1.bf16.msra.mxu0 0
      %968 = vmatprep.mubr.bf16.mxu0 0
      %969 = vmatmul.mubr.bf16.gmra.mrb[0].mxu0 %v928
      %v970 = vpop.f32.mrb[0].mxu0
      %v971 = vadd.f32 0.0, %v970
      %v972 = vpop.f32.mrb[0].mxu0
      %v973 = vadd.f32 0.0, %v972
      %v974 = vpop.f32.mrb[0].mxu0
      %v975 = vpop.f32.mrb[0].mxu0
      %976 = vdwg.mxu0
      %v977 = vadd.f32 %v896, %v971
      %v978 = vadd.f32 %v897, %v973
      %v979 = vld [vmem:[#allocation2 + $0x2] sm:$0x3f]
      %s980 = scalar_lea.vmem %s1, 12
      %v981 = vld [vmem:[%s980] sm:$0x3]
      %v983 = vcombine.high %v979, %v979
      %v985 = vunpack.c.l.s4 1983009808
      %v986 = vunpack.c.0.s8 %v985
      %v987 = vlaneseq
      %v988 = vshrl.u32 %v987, 7
      %v989 = vsub.s32 %v986, %v988
      %v990 = vrot.slane %v979, %v989
      %v992 = vunpack.c.l.s4 1983009808
      %v993 = vunpack.c.0.s8 %v992
      %v994 = vlaneseq
      %v995 = vshrl.u32 %v994, 7
      %v996 = vsub.s32 %v993, %v995
      %v997 = vrot.slane %v983, %v996
      %v998 = vcombine.high %v990, %v990
      %999 = vrot.lane.b32.xlu0 %v990, 113
      %v1000 = vpop.permute.xlu0 %999
      %1001 = vrot.lane.b32.xlu0 %v998, 113
      %v1002 = vpop.permute.xlu0 %1001
      %1003 = vrot.lane.b32.xlu0 %v997, 113
      %v1004 = vpop.permute.xlu0 %1003
      %vm1005 = vcmask 924672
      %v1006 = vsel %vm1005, %v1000, %v1002
      %v1007 = vsel %vm1005, %v1002, %v1004
      %v1009 = vsel %vm544, %v981, 0
      %v1012 = vsel %vm548, %v1006, 0
      %v1015 = vsel %vm548, %v1007, 0
      %1017 = vmatprep.subr.bf16.mxu0 %v1015
      %1018 = vmatpush1.bf16.msra.mxu0 %v1012
      %1019 = vmatprep.subr.bf16.mxu0 0
      %1020 = vmatpush1.bf16.msra.mxu0 0
      %1021 = vmatprep.subr.bf16.mxu0 0
      %1022 = vmatpush1.bf16.msra.mxu0 0
      %1023 = vmatprep.subr.bf16.mxu0 0
      %1024 = vmatpush1.bf16.msra.mxu0 0
      %1025 = vmatprep.subr.bf16.mxu0 0
      %1026 = vmatpush1.bf16.msra.mxu0 0
      %1027 = vmatprep.subr.bf16.mxu0 0
      %1028 = vmatpush1.bf16.msra.mxu0 0
      %1029 = vmatprep.subr.bf16.mxu0 0
      %1030 = vmatpush1.bf16.msra.mxu0 0
      %1031 = vmatprep.subr.bf16.mxu0 0
      %1032 = vmatpush1.bf16.msra.mxu0 0
      %1033 = vmatprep.subr.bf16.mxu0 0
      %1034 = vmatpush1.bf16.msra.mxu0 0
      %1035 = vmatprep.subr.bf16.mxu0 0
      %1036 = vmatpush1.bf16.msra.mxu0 0
      %1037 = vmatprep.subr.bf16.mxu0 0
      %1038 = vmatpush1.bf16.msra.mxu0 0
      %1039 = vmatprep.subr.bf16.mxu0 0
      %1040 = vmatpush1.bf16.msra.mxu0 0
      %1041 = vmatprep.subr.bf16.mxu0 0
      %1042 = vmatpush1.bf16.msra.mxu0 0
      %1043 = vmatprep.subr.bf16.mxu0 0
      %1044 = vmatpush1.bf16.msra.mxu0 0
      %1045 = vmatprep.subr.bf16.mxu0 0
      %1046 = vmatpush1.bf16.msra.mxu0 0
      %1047 = vmatprep.subr.bf16.mxu0 0
      %1048 = vmatpush1.bf16.msra.mxu0 0
      %1049 = vmatprep.mubr.bf16.mxu0 0
      %1050 = vmatmul.mubr.bf16.gmra.mrb[0].mxu0 %v1009
      %v1051 = vpop.f32.mrb[0].mxu0
      %v1052 = vadd.f32 0.0, %v1051
      %v1053 = vpop.f32.mrb[0].mxu0
      %v1054 = vadd.f32 0.0, %v1053
      %v1055 = vpop.f32.mrb[0].mxu0
      %v1056 = vpop.f32.mrb[0].mxu0
      %1057 = vdwg.mxu0
      %v1058 = vadd.f32 %v977, %v1052
      %v1059 = vadd.f32 %v978, %v1054
      %v1060 = vld [vmem:[#allocation3 + $0x2] sm:$0x3f]
      %s1061 = scalar_lea.vmem %s1, 14
      %v1062 = vld [vmem:[%s1061] sm:$0x3]
      %v1064 = vcombine.high %v1060, %v1060
      %v1066 = vunpack.c.l.s4 1983009808
      %v1067 = vunpack.c.0.s8 %v1066
      %v1068 = vlaneseq
      %v1069 = vshrl.u32 %v1068, 7
      %v1070 = vsub.s32 %v1067, %v1069
      %v1071 = vrot.slane %v1060, %v1070
      %v1073 = vunpack.c.l.s4 1983009808
      %v1074 = vunpack.c.0.s8 %v1073
      %v1075 = vlaneseq
      %v1076 = vshrl.u32 %v1075, 7
      %v1077 = vsub.s32 %v1074, %v1076
      %v1078 = vrot.slane %v1064, %v1077
      %v1079 = vcombine.high %v1071, %v1071
      %1080 = vrot.lane.b32.xlu0 %v1071, 112
      %v1081 = vpop.permute.xlu0 %1080
      %1082 = vrot.lane.b32.xlu0 %v1079, 112
      %v1083 = vpop.permute.xlu0 %1082
      %1084 = vrot.lane.b32.xlu0 %v1078, 112
      %v1085 = vpop.permute.xlu0 %1084
      %vm1086 = vcmask 916480
      %v1087 = vsel %vm1086, %v1081, %v1083
      %v1088 = vsel %vm1086, %v1083, %v1085
      %v1090 = vsel %vm544, %v1062, 0
      %v1093 = vsel %vm548, %v1087, 0
      %v1096 = vsel %vm548, %v1088, 0
      %1098 = vmatprep.subr.bf16.mxu0 %v1096
      %1099 = vmatpush1.bf16.msra.mxu0 %v1093
      %1100 = vmatprep.subr.bf16.mxu0 0
      %1101 = vmatpush1.bf16.msra.mxu0 0
      %1102 = vmatprep.subr.bf16.mxu0 0
      %1103 = vmatpush1.bf16.msra.mxu0 0
      %1104 = vmatprep.subr.bf16.mxu0 0
      %1105 = vmatpush1.bf16.msra.mxu0 0
      %1106 = vmatprep.subr.bf16.mxu0 0
      %1107 = vmatpush1.bf16.msra.mxu0 0
      %1108 = vmatprep.subr.bf16.mxu0 0
      %1109 = vmatpush1.bf16.msra.mxu0 0
      %1110 = vmatprep.subr.bf16.mxu0 0
      %1111 = vmatpush1.bf16.msra.mxu0 0
      %1112 = vmatprep.subr.bf16.mxu0 0
      %1113 = vmatpush1.bf16.msra.mxu0 0
      %1114 = vmatprep.subr.bf16.mxu0 0
      %1115 = vmatpush1.bf16.msra.mxu0 0
      %1116 = vmatprep.subr.bf16.mxu0 0
      %1117 = vmatpush1.bf16.msra.mxu0 0
      %1118 = vmatprep.subr.bf16.mxu0 0
      %1119 = vmatpush1.bf16.msra.mxu0 0
      %1120 = vmatprep.subr.bf16.mxu0 0
      %1121 = vmatpush1.bf16.msra.mxu0 0
      %1122 = vmatprep.subr.bf16.mxu0 0
      %1123 = vmatpush1.bf16.msra.mxu0 0
      %1124 = vmatprep.subr.bf16.mxu0 0
      %1125 = vmatpush1.bf16.msra.mxu0 0
      %1126 = vmatprep.subr.bf16.mxu0 0
      %1127 = vmatpush1.bf16.msra.mxu0 0
      %1128 = vmatprep.subr.bf16.mxu0 0
      %1129 = vmatpush1.bf16.msra.mxu0 0
      %1130 = vmatprep.mubr.bf16.mxu0 0
      %1131 = vmatmul.mubr.bf16.gmra.mrb[0].mxu0 %v1090
      %v1132 = vpop.f32.mrb[0].mxu0
      %v1133 = vadd.f32 0.0, %v1132
      %v1134 = vpop.f32.mrb[0].mxu0
      %v1135 = vadd.f32 0.0, %v1134
      %v1136 = vpop.f32.mrb[0].mxu0
      %v1137 = vpop.f32.mrb[0].mxu0
      %1138 = vdwg.mxu0
      %v1139 = vadd.f32 %v1058, %v1133
      %v1140 = vadd.f32 %v1059, %v1135
      %v1141 = vld [vmem:[#allocation4 + $0x2] sm:$0x3f]
      %s1142 = scalar_lea.vmem %s1, 16
      %v1143 = vld [vmem:[%s1142] sm:$0x3]
      %v1145 = vcombine.high %v1141, %v1141
      %v1147 = vunpack.c.l.s4 1983009808
      %v1148 = vunpack.c.0.s8 %v1147
      %v1149 = vlaneseq
      %v1150 = vshrl.u32 %v1149, 7
      %v1151 = vsub.s32 %v1148, %v1150
      %v1152 = vrot.slane %v1141, %v1151
      %v1154 = vunpack.c.l.s4 1983009808
      %v1155 = vunpack.c.0.s8 %v1154
      %v1156 = vlaneseq
      %v1157 = vshrl.u32 %v1156, 7
      %v1158 = vsub.s32 %v1155, %v1157
      %v1159 = vrot.slane %v1145, %v1158
      %v1160 = vcombine.high %v1152, %v1152
      %1161 = vrot.lane.b32.xlu0 %v1152, 111
      %v1162 = vpop.permute.xlu0 %1161
      %1163 = vrot.lane.b32.xlu0 %v1160, 111
      %v1164 = vpop.permute.xlu0 %1163
      %1165 = vrot.lane.b32.xlu0 %v1159, 111
      %v1166 = vpop.permute.xlu0 %1165
      %vm1167 = vcmask 908288
      %v1168 = vsel %vm1167, %v1162, %v1164
      %v1169 = vsel %vm1167, %v1164, %v1166
      %v1171 = vsel %vm544, %v1143, 0
      %v1174 = vsel %vm548, %v1168, 0
      %v1177 = vsel %vm548, %v1169, 0
      %1179 = vmatprep.subr.bf16.mxu0 %v1177
      %1180 = vmatpush1.bf16.msra.mxu0 %v1174
      %1181 = vmatprep.subr.bf16.mxu0 0
      %1182 = vmatpush1.bf16.msra.mxu0 0
      %1183 = vmatprep.subr.bf16.mxu0 0
      %1184 = vmatpush1.bf16.msra.mxu0 0
      %1185 = vmatprep.subr.bf16.mxu0 0
      %1186 = vmatpush1.bf16.msra.mxu0 0
      %1187 = vmatprep.subr.bf16.mxu0 0
      %1188 = vmatpush1.bf16.msra.mxu0 0
      %1189 = vmatprep.subr.bf16.mxu0 0
      %1190 = vmatpush1.bf16.msra.mxu0 0
      %1191 = vmatprep.subr.bf16.mxu0 0
      %1192 = vmatpush1.bf16.msra.mxu0 0
      %1193 = vmatprep.subr.bf16.mxu0 0
      %1194 = vmatpush1.bf16.msra.mxu0 0
      %1195 = vmatprep.subr.bf16.mxu0 0
      %1196 = vmatpush1.bf16.msra.mxu0 0
      %1197 = vmatprep.subr.bf16.mxu0 0
      %1198 = vmatpush1.bf16.msra.mxu0 0
      %1199 = vmatprep.subr.bf16.mxu0 0
      %1200 = vmatpush1.bf16.msra.mxu0 0
      %1201 = vmatprep.subr.bf16.mxu0 0
      %1202 = vmatpush1.bf16.msra.mxu0 0
      %1203 = vmatprep.subr.bf16.mxu0 0
      %1204 = vmatpush1.bf16.msra.mxu0 0
      %1205 = vmatprep.subr.bf16.mxu0 0
      %1206 = vmatpush1.bf16.msra.mxu0 0
      %1207 = vmatprep.subr.bf16.mxu0 0
      %1208 = vmatpush1.bf16.msra.mxu0 0
      %1209 = vmatprep.subr.bf16.mxu0 0
      %1210 = vmatpush1.bf16.msra.mxu0 0
      %1211 = vmatprep.mubr.bf16.mxu0 0
      %1212 = vmatmul.mubr.bf16.gmra.mrb[0].mxu0 %v1171
      %v1213 = vpop.f32.mrb[0].mxu0
      %v1214 = vadd.f32 0.0, %v1213
      %v1215 = vpop.f32.mrb[0].mxu0
      %v1216 = vadd.f32 0.0, %v1215
      %v1217 = vpop.f32.mrb[0].mxu0
      %v1218 = vpop.f32.mrb[0].mxu0
      %1219 = vdwg.mxu0
      %v1220 = vadd.f32 %v1139, %v1214
      %v1221 = vadd.f32 %v1140, %v1216
      %1223 = vset.pattern.permute.xlu0 0
      %1224 = vperm.xlu0 %1223, %v511
      %v1225 = vpop.permute.xlu0 %1224
      %v1227 = vmul.f32 %v1220, %v1225
      %v1228 = vmul.f32 %v1221, %v1225
      %1230 = vset.pattern.permute.xlu0 0
      %1231 = vperm.xlu0 %1230, %v512
      %v1232 = vpop.permute.xlu0 %1231
      %v1234 = vadd.f32 %v1227, %v1232
      %v1235 = vadd.f32 %v1228, %v1232
      %vm1236 = vcmp.ge.f32.partialorder %v1234, 0.0
      %vm1237 = vcmp.ge.f32.partialorder %v1235, 0.0
      %v1238 = vmul.f32 %v1234, 0.001
      %v1239 = vmul.f32 %v1235, 0.001
      %v1240 = vsel %vm1236, %v1234, %v1238
      %v1241 = vsel %vm1237, %v1235, %v1239
      %v1242 = vpack.c.bf16 %v1240, %v1240
      %v1243 = vpack.c.bf16 %v1241, %v1241
      %v1246 = vcombine.low %v1242, %v1243
      %v1248 = vunpack.c.l.s4 1983009808
      %v1249 = vunpack.c.0.s8 %v1248
      %v1250 = vlaneseq
      %v1251 = vshrl.u32 %v1250, 7
      %v1252 = vsub.s32 %v1249, %v1251
      %v1253 = vrot.slane %v1246, %v1252
      %1255 = vst [vmem:[#allocation6 + $0x2] sm:$0xf] %v1253
      %v1256 = vsel %vm465, %v1242, 0
      %v1257 = vsel %vm466, %v1243, 0
      %v1260 = vcombine.low %v1256, %v1257
      %v1262 = vunpack.c.l.s4 1983009808
      %v1263 = vunpack.c.0.s8 %v1262
      %v1264 = vlaneseq
      %v1265 = vshrl.u32 %v1264, 7
      %v1266 = vsub.s32 %v1263, %v1265
      %v1267 = vrot.slane %v1260, %v1266
      %1269 = vst [vmem:[#allocation5 + $0x2] sm:$0xf] %v1267
      %v1270 = vsel %vm495, %v1242, 0
      %v1271 = vsel %vm496, %v1243, 0
      %v1274 = vcombine.low %v1270, %v1271
      %v1276 = vunpack.c.l.s4 1983009808
      %v1277 = vunpack.c.0.s8 %v1276
      %v1278 = vlaneseq
      %v1279 = vshrl.u32 %v1278, 7
      %v1280 = vsub.s32 %v1277, %v1279
      %v1281 = vrot.slane %v1274, %v1280
      %1283 = vst [vmem:[#allocation7 + $0x2] sm:$0xf] %v1281
      %v1284 = vld [vmem:[%s5] sm:$0xf]
      %v1285 = vld [vmem:[%s6] sm:$0xf]
      %vm1286 = vcmask 3072
      %1287 = vst.msk [vmem:[#allocation9] sm:$0xf] %vm1286, 0.0
      %v1288 = vld [vmem:[#allocation5] sm:$0x3f]
      %v1289 = vld [vmem:[%s2] sm:$0x3]
      %v1290 = vld [vmem:[#allocation6] sm:$0x3f]
      %s1291 = scalar_lea.vmem %s2, 2
      %v1292 = vld [vmem:[%s1291] sm:$0x3]
      %v1294 = vcombine.high %v1290, %v1290
      %v1296 = vunpack.c.l.s4 1983009808
      %v1297 = vunpack.c.0.s8 %v1296
      %v1298 = vlaneseq
      %v1299 = vshrl.u32 %v1298, 7
      %v1300 = vsub.s32 %v1297, %v1299
      %v1301 = vrot.slane %v1290, %v1300
      %v1303 = vunpack.c.l.s4 1983009808
      %v1304 = vunpack.c.0.s8 %v1303
      %v1305 = vlaneseq
      %v1306 = vshrl.u32 %v1305, 7
      %v1307 = vsub.s32 %v1304, %v1306
      %v1308 = vrot.slane %v1294, %v1307
      %v1309 = vcombine.high %v1301, %v1301
      %1310 = vrot.lane.b32.xlu0 %v1301, 16
      %v1311 = vpop.permute.xlu0 %1310
      %1312 = vrot.lane.b32.xlu0 %v1309, 16
      %v1313 = vpop.permute.xlu0 %1312
      %1314 = vrot.lane.b32.xlu0 %v1308, 16
      %v1315 = vpop.permute.xlu0 %1314
      %v1316 = vsel %vm541, %v1311, %v1313
      %v1317 = vsel %vm541, %v1313, %v1315
      %v1319 = vsel %vm544, %v1292, 0
      %v1322 = vsel %vm548, %v1316, 0
      %v1325 = vsel %vm548, %v1317, 0
      %1327 = vmatprep.subr.bf16.mxu0 %v1325
      %1328 = vmatpush1.bf16.msra.mxu0 %v1322
      %1329 = vmatprep.subr.bf16.mxu0 0
      %1330 = vmatpush1.bf16.msra.mxu0 0
      %1331 = vmatprep.subr.bf16.mxu0 0
      %1332 = vmatpush1.bf16.msra.mxu0 0
      %1333 = vmatprep.subr.bf16.mxu0 0
      %1334 = vmatpush1.bf16.msra.mxu0 0
      %1335 = vmatprep.subr.bf16.mxu0 0
      %1336 = vmatpush1.bf16.msra.mxu0 0
      %1337 = vmatprep.subr.bf16.mxu0 0
      %1338 = vmatpush1.bf16.msra.mxu0 0
      %1339 = vmatprep.subr.bf16.mxu0 0
      %1340 = vmatpush1.bf16.msra.mxu0 0
      %1341 = vmatprep.subr.bf16.mxu0 0
      %1342 = vmatpush1.bf16.msra.mxu0 0
      %1343 = vmatprep.subr.bf16.mxu0 0
      %1344 = vmatpush1.bf16.msra.mxu0 0
      %1345 = vmatprep.subr.bf16.mxu0 0
      %1346 = vmatpush1.bf16.msra.mxu0 0
      %1347 = vmatprep.subr.bf16.mxu0 0
      %1348 = vmatpush1.bf16.msra.mxu0 0
      %1349 = vmatprep.subr.bf16.mxu0 0
      %1350 = vmatpush1.bf16.msra.mxu0 0
      %1351 = vmatprep.subr.bf16.mxu0 0
      %1352 = vmatpush1.bf16.msra.mxu0 0
      %1353 = vmatprep.subr.bf16.mxu0 0
      %1354 = vmatpush1.bf16.msra.mxu0 0
      %1355 = vmatprep.subr.bf16.mxu0 0
      %1356 = vmatpush1.bf16.msra.mxu0 0
      %1357 = vmatprep.subr.bf16.mxu0 0
      %1358 = vmatpush1.bf16.msra.mxu0 0
      %1359 = vmatprep.mubr.bf16.mxu0 0
      %1360 = vmatmul.mubr.bf16.gmra.mrb[0].mxu0 %v1319
      %v1361 = vpop.f32.mrb[0].mxu0
      %v1362 = vadd.f32 0.0, %v1361
      %v1363 = vpop.f32.mrb[0].mxu0
      %v1364 = vadd.f32 0.0, %v1363
      %v1365 = vpop.f32.mrb[0].mxu0
      %v1366 = vpop.f32.mrb[0].mxu0
      %1367 = vdwg.mxu0
      %v1369 = vcombine.high %v1288, %v1288
      %v1371 = vunpack.c.l.s4 1983009808
      %v1372 = vunpack.c.0.s8 %v1371
      %v1373 = vlaneseq
      %v1374 = vshrl.u32 %v1373, 7
      %v1375 = vsub.s32 %v1372, %v1374
      %v1376 = vrot.slane %v1288, %v1375
      %v1378 = vunpack.c.l.s4 1983009808
      %v1379 = vunpack.c.0.s8 %v1378
      %v1380 = vlaneseq
      %v1381 = vshrl.u32 %v1380, 7
      %v1382 = vsub.s32 %v1379, %v1381
      %v1383 = vrot.slane %v1369, %v1382
      %v1384 = vcombine.high %v1376, %v1376
      %1385 = vrot.lane.b32.xlu0 %v1376, 17
      %v1386 = vpop.permute.xlu0 %1385
      %1387 = vrot.lane.b32.xlu0 %v1384, 17
      %v1388 = vpop.permute.xlu0 %1387
      %1389 = vrot.lane.b32.xlu0 %v1383, 17
      %v1390 = vpop.permute.xlu0 %1389
      %v1391 = vsel %vm619, %v1386, %v1388
      %v1392 = vsel %vm619, %v1388, %v1390
      %v1394 = vsel %vm544, %v1289, 0
      %v1397 = vsel %vm548, %v1391, 0
      %v1400 = vsel %vm548, %v1392, 0
      %1402 = vmatprep.subr.bf16.mxu0 %v1400
      %1403 = vmatpush1.bf16.msra.mxu0 %v1397
      %1404 = vmatprep.subr.bf16.mxu0 0
      %1405 = vmatpush1.bf16.msra.mxu0 0
      %1406 = vmatprep.subr.bf16.mxu0 0
      %1407 = vmatpush1.bf16.msra.mxu0 0
      %1408 = vmatprep.subr.bf16.mxu0 0
      %1409 = vmatpush1.bf16.msra.mxu0 0
      %1410 = vmatprep.subr.bf16.mxu0 0
      %1411 = vmatpush1.bf16.msra.mxu0 0
      %1412 = vmatprep.subr.bf16.mxu0 0
      %1413 = vmatpush1.bf16.msra.mxu0 0
      %1414 = vmatprep.subr.bf16.mxu0 0
      %1415 = vmatpush1.bf16.msra.mxu0 0
      %1416 = vmatprep.subr.bf16.mxu0 0
      %1417 = vmatpush1.bf16.msra.mxu0 0
      %1418 = vmatprep.subr.bf16.mxu0 0
      %1419 = vmatpush1.bf16.msra.mxu0 0
      %1420 = vmatprep.subr.bf16.mxu0 0
      %1421 = vmatpush1.bf16.msra.mxu0 0
      %1422 = vmatprep.subr.bf16.mxu0 0
      %1423 = vmatpush1.bf16.msra.mxu0 0
      %1424 = vmatprep.subr.bf16.mxu0 0
      %1425 = vmatpush1.bf16.msra.mxu0 0
      %1426 = vmatprep.subr.bf16.mxu0 0
      %1427 = vmatpush1.bf16.msra.mxu0 0
      %1428 = vmatprep.subr.bf16.mxu0 0
      %1429 = vmatpush1.bf16.msra.mxu0 0
      %1430 = vmatprep.subr.bf16.mxu0 0
      %1431 = vmatpush1.bf16.msra.mxu0 0
      %1432 = vmatprep.subr.bf16.mxu0 0
      %1433 = vmatpush1.bf16.msra.mxu0 0
      %1434 = vmatprep.mubr.bf16.mxu0 0
      %1435 = vmatmul.mubr.bf16.gmra.mrb[0].mxu0 %v1394
      %v1436 = vpop.f32.mrb[0].mxu0
      %v1437 = vadd.f32 %v1362, %v1436
      %v1438 = vpop.f32.mrb[0].mxu0
      %v1439 = vadd.f32 %v1364, %v1438
      %v1440 = vpop.f32.mrb[0].mxu0
      %v1441 = vpop.f32.mrb[0].mxu0
      %1442 = vdwg.mxu0
      %v1443 = vld [vmem:[#allocation7] sm:$0x3f]
      %s1444 = scalar_lea.vmem %s2, 4
      %v1445 = vld [vmem:[%s1444] sm:$0x3]
      %v1447 = vcombine.high %v1443, %v1443
      %v1449 = vunpack.c.l.s4 1983009808
      %v1450 = vunpack.c.0.s8 %v1449
      %v1451 = vlaneseq
      %v1452 = vshrl.u32 %v1451, 7
      %v1453 = vsub.s32 %v1450, %v1452
      %v1454 = vrot.slane %v1443, %v1453
      %v1456 = vunpack.c.l.s4 1983009808
      %v1457 = vunpack.c.0.s8 %v1456
      %v1458 = vlaneseq
      %v1459 = vshrl.u32 %v1458, 7
      %v1460 = vsub.s32 %v1457, %v1459
      %v1461 = vrot.slane %v1447, %v1460
      %v1462 = vcombine.high %v1454, %v1454
      %1463 = vrot.lane.b32.xlu0 %v1454, 15
      %v1464 = vpop.permute.xlu0 %1463
      %1465 = vrot.lane.b32.xlu0 %v1462, 15
      %v1466 = vpop.permute.xlu0 %1465
      %1467 = vrot.lane.b32.xlu0 %v1461, 15
      %v1468 = vpop.permute.xlu0 %1467
      %v1469 = vsel %vm698, %v1464, %v1466
      %v1470 = vsel %vm698, %v1466, %v1468
      %v1472 = vsel %vm544, %v1445, 0
      %v1475 = vsel %vm548, %v1469, 0
      %v1478 = vsel %vm548, %v1470, 0
      %1480 = vmatprep.subr.bf16.mxu0 %v1478
      %1481 = vmatpush1.bf16.msra.mxu0 %v1475
      %1482 = vmatprep.subr.bf16.mxu0 0
      %1483 = vmatpush1.bf16.msra.mxu0 0
      %1484 = vmatprep.subr.bf16.mxu0 0
      %1485 = vmatpush1.bf16.msra.mxu0 0
      %1486 = vmatprep.subr.bf16.mxu0 0
      %1487 = vmatpush1.bf16.msra.mxu0 0
      %1488 = vmatprep.subr.bf16.mxu0 0
      %1489 = vmatpush1.bf16.msra.mxu0 0
      %1490 = vmatprep.subr.bf16.mxu0 0
      %1491 = vmatpush1.bf16.msra.mxu0 0
      %1492 = vmatprep.subr.bf16.mxu0 0
      %1493 = vmatpush1.bf16.msra.mxu0 0
      %1494 = vmatprep.subr.bf16.mxu0 0
      %1495 = vmatpush1.bf16.msra.mxu0 0
      %1496 = vmatprep.subr.bf16.mxu0 0
      %1497 = vmatpush1.bf16.msra.mxu0 0
      %1498 = vmatprep.subr.bf16.mxu0 0
      %1499 = vmatpush1.bf16.msra.mxu0 0
      %1500 = vmatprep.subr.bf16.mxu0 0
      %1501 = vmatpush1.bf16.msra.mxu0 0
      %1502 = vmatprep.subr.bf16.mxu0 0
      %1503 = vmatpush1.bf16.msra.mxu0 0
      %1504 = vmatprep.subr.bf16.mxu0 0
      %1505 = vmatpush1.bf16.msra.mxu0 0
      %1506 = vmatprep.subr.bf16.mxu0 0
      %1507 = vmatpush1.bf16.msra.mxu0 0
      %1508 = vmatprep.subr.bf16.mxu0 0
      %1509 = vmatpush1.bf16.msra.mxu0 0
      %1510 = vmatprep.subr.bf16.mxu0 0
      %1511 = vmatpush1.bf16.msra.mxu0 0
      %1512 = vmatprep.mubr.bf16.mxu0 0
      %1513 = vmatmul.mubr.bf16.gmra.mrb[0].mxu0 %v1472
      %v1514 = vpop.f32.mrb[0].mxu0
      %v1515 = vadd.f32 0.0, %v1514
      %v1516 = vpop.f32.mrb[0].mxu0
      %v1517 = vadd.f32 0.0, %v1516
      %v1518 = vpop.f32.mrb[0].mxu0
      %v1519 = vpop.f32.mrb[0].mxu0
      %1520 = vdwg.mxu0
      %v1521 = vadd.f32 %v1437, %v1515
      %v1522 = vadd.f32 %v1439, %v1517
      %v1523 = vld [vmem:[#allocation5] sm:$0x3f]
      %s1524 = scalar_lea.vmem %s2, 6
      %v1525 = vld [vmem:[%s1524] sm:$0x3]
      %v1527 = vcombine.high %v1523, %v1523
      %v1529 = vunpack.c.l.s4 1983009808
      %v1530 = vunpack.c.0.s8 %v1529
      %v1531 = vlaneseq
      %v1532 = vshrl.u32 %v1531, 7
      %v1533 = vsub.s32 %v1530, %v1532
      %v1534 = vrot.slane %v1523, %v1533
      %v1536 = vunpack.c.l.s4 1983009808
      %v1537 = vunpack.c.0.s8 %v1536
      %v1538 = vlaneseq
      %v1539 = vshrl.u32 %v1538, 7
      %v1540 = vsub.s32 %v1537, %v1539
      %v1541 = vrot.slane %v1527, %v1540
      %v1542 = vcombine.high %v1534, %v1534
      %1543 = vrot.lane.b32.xlu0 %v1534, 1
      %v1544 = vpop.permute.xlu0 %1543
      %1545 = vrot.lane.b32.xlu0 %v1542, 1
      %v1546 = vpop.permute.xlu0 %1545
      %1547 = vrot.lane.b32.xlu0 %v1541, 1
      %v1548 = vpop.permute.xlu0 %1547
      %v1549 = vsel %vm779, %v1544, %v1546
      %v1550 = vsel %vm779, %v1546, %v1548
      %v1552 = vsel %vm544, %v1525, 0
      %v1555 = vsel %vm548, %v1549, 0
      %v1558 = vsel %vm548, %v1550, 0
      %1560 = vmatprep.subr.bf16.mxu0 %v1558
      %1561 = vmatpush1.bf16.msra.mxu0 %v1555
      %1562 = vmatprep.subr.bf16.mxu0 0
      %1563 = vmatpush1.bf16.msra.mxu0 0
      %1564 = vmatprep.subr.bf16.mxu0 0
      %1565 = vmatpush1.bf16.msra.mxu0 0
      %1566 = vmatprep.subr.bf16.mxu0 0
      %1567 = vmatpush1.bf16.msra.mxu0 0
      %1568 = vmatprep.subr.bf16.mxu0 0
      %1569 = vmatpush1.bf16.msra.mxu0 0
      %1570 = vmatprep.subr.bf16.mxu0 0
      %1571 = vmatpush1.bf16.msra.mxu0 0
      %1572 = vmatprep.subr.bf16.mxu0 0
      %1573 = vmatpush1.bf16.msra.mxu0 0
      %1574 = vmatprep.subr.bf16.mxu0 0
      %1575 = vmatpush1.bf16.msra.mxu0 0
      %1576 = vmatprep.subr.bf16.mxu0 0
      %1577 = vmatpush1.bf16.msra.mxu0 0
      %1578 = vmatprep.subr.bf16.mxu0 0
      %1579 = vmatpush1.bf16.msra.mxu0 0
      %1580 = vmatprep.subr.bf16.mxu0 0
      %1581 = vmatpush1.bf16.msra.mxu0 0
      %1582 = vmatprep.subr.bf16.mxu0 0
      %1583 = vmatpush1.bf16.msra.mxu0 0
      %1584 = vmatprep.subr.bf16.mxu0 0
      %1585 = vmatpush1.bf16.msra.mxu0 0
      %1586 = vmatprep.subr.bf16.mxu0 0
      %1587 = vmatpush1.bf16.msra.mxu0 0
      %1588 = vmatprep.subr.bf16.mxu0 0
      %1589 = vmatpush1.bf16.msra.mxu0 0
      %1590 = vmatprep.subr.bf16.mxu0 0
      %1591 = vmatpush1.bf16.msra.mxu0 0
      %1592 = vmatprep.mubr.bf16.mxu0 0
      %1593 = vmatmul.mubr.bf16.gmra.mrb[0].mxu0 %v1552
      %v1594 = vpop.f32.mrb[0].mxu0
      %v1595 = vadd.f32 0.0, %v1594
      %v1596 = vpop.f32.mrb[0].mxu0
      %v1597 = vadd.f32 0.0, %v1596
      %v1598 = vpop.f32.mrb[0].mxu0
      %v1599 = vpop.f32.mrb[0].mxu0
      %1600 = vdwg.mxu0
      %v1601 = vadd.f32 %v1521, %v1595
      %v1602 = vadd.f32 %v1522, %v1597
      %v1603 = vld [vmem:[#allocation6 + $0x2] sm:$0xf]
      %s1604 = scalar_lea.vmem %s2, 8
      %v1605 = vld [vmem:[%s1604] sm:$0x3]
      %v1608 = vunpack.c.l.s4 1983009808
      %v1609 = vunpack.c.0.s8 %v1608
      %v1610 = vlaneseq
      %v1611 = vshrl.u32 %v1610, 7
      %v1612 = vsub.s32 %v1609, %v1611
      %v1613 = vrot.slane %v1603, %v1612
      %v1614 = vcombine.high %v1613, %v1613
      %v1616 = vsel %vm544, %v1605, 0
      %v1619 = vsel %vm548, %v1613, 0
      %v1622 = vsel %vm548, %v1614, 0
      %1624 = vmatprep.subr.bf16.mxu0 %v1622
      %1625 = vmatpush1.bf16.msra.mxu0 %v1619
      %1626 = vmatprep.subr.bf16.mxu0 0
      %1627 = vmatpush1.bf16.msra.mxu0 0
      %1628 = vmatprep.subr.bf16.mxu0 0
      %1629 = vmatpush1.bf16.msra.mxu0 0
      %1630 = vmatprep.subr.bf16.mxu0 0
      %1631 = vmatpush1.bf16.msra.mxu0 0
      %1632 = vmatprep.subr.bf16.mxu0 0
      %1633 = vmatpush1.bf16.msra.mxu0 0
      %1634 = vmatprep.subr.bf16.mxu0 0
      %1635 = vmatpush1.bf16.msra.mxu0 0
      %1636 = vmatprep.subr.bf16.mxu0 0
      %1637 = vmatpush1.bf16.msra.mxu0 0
      %1638 = vmatprep.subr.bf16.mxu0 0
      %1639 = vmatpush1.bf16.msra.mxu0 0
      %1640 = vmatprep.subr.bf16.mxu0 0
      %1641 = vmatpush1.bf16.msra.mxu0 0
      %1642 = vmatprep.subr.bf16.mxu0 0
      %1643 = vmatpush1.bf16.msra.mxu0 0
      %1644 = vmatprep.subr.bf16.mxu0 0
      %1645 = vmatpush1.bf16.msra.mxu0 0
      %1646 = vmatprep.subr.bf16.mxu0 0
      %1647 = vmatpush1.bf16.msra.mxu0 0
      %1648 = vmatprep.subr.bf16.mxu0 0
      %1649 = vmatpush1.bf16.msra.mxu0 0
      %1650 = vmatprep.subr.bf16.mxu0 0
      %1651 = vmatpush1.bf16.msra.mxu0 0
      %1652 = vmatprep.subr.bf16.mxu0 0
      %1653 = vmatpush1.bf16.msra.mxu0 0
      %1654 = vmatprep.subr.bf16.mxu0 0
      %1655 = vmatpush1.bf16.msra.mxu0 0
      %1656 = vmatprep.mubr.bf16.mxu0 0
      %1657 = vmatmul.mubr.bf16.gmra.mrb[0].mxu0 %v1616
      %v1658 = vpop.f32.mrb[0].mxu0
      %v1659 = vadd.f32 0.0, %v1658
      %v1660 = vpop.f32.mrb[0].mxu0
      %v1661 = vadd.f32 0.0, %v1660
      %v1662 = vpop.f32.mrb[0].mxu0
      %v1663 = vpop.f32.mrb[0].mxu0
      %1664 = vdwg.mxu0
      %v1665 = vadd.f32 %v1601, %v1659
      %v1666 = vadd.f32 %v1602, %v1661
      %v1667 = vld [vmem:[#allocation7 + $0x2] sm:$0x3f]
      %s1668 = scalar_lea.vmem %s2, 10
      %v1669 = vld [vmem:[%s1668] sm:$0x3]
      %v1671 = vcombine.high %v1667, %v1667
      %v1673 = vunpack.c.l.s4 1983009808
      %v1674 = vunpack.c.0.s8 %v1673
      %v1675 = vlaneseq
      %v1676 = vshrl.u32 %v1675, 7
      %v1677 = vsub.s32 %v1674, %v1676
      %v1678 = vrot.slane %v1667, %v1677
      %v1680 = vunpack.c.l.s4 1983009808
      %v1681 = vunpack.c.0.s8 %v1680
      %v1682 = vlaneseq
      %v1683 = vshrl.u32 %v1682, 7
      %v1684 = vsub.s32 %v1681, %v1683
      %v1685 = vrot.slane %v1671, %v1684
      %v1686 = vcombine.high %v1678, %v1678
      %1687 = vrot.lane.b32.xlu0 %v1678, 127
      %v1688 = vpop.permute.xlu0 %1687
      %1689 = vrot.lane.b32.xlu0 %v1686, 127
      %v1690 = vpop.permute.xlu0 %1689
      %1691 = vrot.lane.b32.xlu0 %v1685, 127
      %v1692 = vpop.permute.xlu0 %1691
      %v1693 = vsel %vm924, %v1688, %v1690
      %v1694 = vsel %vm924, %v1690, %v1692
      %v1696 = vsel %vm544, %v1669, 0
      %v1699 = vsel %vm548, %v1693, 0
      %v1702 = vsel %vm548, %v1694, 0
      %1704 = vmatprep.subr.bf16.mxu0 %v1702
      %1705 = vmatpush1.bf16.msra.mxu0 %v1699
      %1706 = vmatprep.subr.bf16.mxu0 0
      %1707 = vmatpush1.bf16.msra.mxu0 0
      %1708 = vmatprep.subr.bf16.mxu0 0
      %1709 = vmatpush1.bf16.msra.mxu0 0
      %1710 = vmatprep.subr.bf16.mxu0 0
      %1711 = vmatpush1.bf16.msra.mxu0 0
      %1712 = vmatprep.subr.bf16.mxu0 0
      %1713 = vmatpush1.bf16.msra.mxu0 0
      %1714 = vmatprep.subr.bf16.mxu0 0
      %1715 = vmatpush1.bf16.msra.mxu0 0
      %1716 = vmatprep.subr.bf16.mxu0 0
      %1717 = vmatpush1.bf16.msra.mxu0 0
      %1718 = vmatprep.subr.bf16.mxu0 0
      %1719 = vmatpush1.bf16.msra.mxu0 0
      %1720 = vmatprep.subr.bf16.mxu0 0
      %1721 = vmatpush1.bf16.msra.mxu0 0
      %1722 = vmatprep.subr.bf16.mxu0 0
      %1723 = vmatpush1.bf16.msra.mxu0 0
      %1724 = vmatprep.subr.bf16.mxu0 0
      %1725 = vmatpush1.bf16.msra.mxu0 0
      %1726 = vmatprep.subr.bf16.mxu0 0
      %1727 = vmatpush1.bf16.msra.mxu0 0
      %1728 = vmatprep.subr.bf16.mxu0 0
      %1729 = vmatpush1.bf16.msra.mxu0 0
      %1730 = vmatprep.subr.bf16.mxu0 0
      %1731 = vmatpush1.bf16.msra.mxu0 0
      %1732 = vmatprep.subr.bf16.mxu0 0
      %1733 = vmatpush1.bf16.msra.mxu0 0
      %1734 = vmatprep.subr.bf16.mxu0 0
      %1735 = vmatpush1.bf16.msra.mxu0 0
      %1736 = vmatprep.mubr.bf16.mxu0 0
      %1737 = vmatmul.mubr.bf16.gmra.mrb[0].mxu0 %v1696
      %v1738 = vpop.f32.mrb[0].mxu0
      %v1739 = vadd.f32 0.0, %v1738
      %v1740 = vpop.f32.mrb[0].mxu0
      %v1741 = vadd.f32 0.0, %v1740
      %v1742 = vpop.f32.mrb[0].mxu0
      %v1743 = vpop.f32.mrb[0].mxu0
      %1744 = vdwg.mxu0
      %v1745 = vadd.f32 %v1665, %v1739
      %v1746 = vadd.f32 %v1666, %v1741
      %v1747 = vld [vmem:[#allocation5 + $0x2] sm:$0x3f]
      %s1748 = scalar_lea.vmem %s2, 12
      %v1749 = vld [vmem:[%s1748] sm:$0x3]
      %v1751 = vcombine.high %v1747, %v1747
      %v1753 = vunpack.c.l.s4 1983009808
      %v1754 = vunpack.c.0.s8 %v1753
      %v1755 = vlaneseq
      %v1756 = vshrl.u32 %v1755, 7
      %v1757 = vsub.s32 %v1754, %v1756
      %v1758 = vrot.slane %v1747, %v1757
      %v1760 = vunpack.c.l.s4 1983009808
      %v1761 = vunpack.c.0.s8 %v1760
      %v1762 = vlaneseq
      %v1763 = vshrl.u32 %v1762, 7
      %v1764 = vsub.s32 %v1761, %v1763
      %v1765 = vrot.slane %v1751, %v1764
      %v1766 = vcombine.high %v1758, %v1758
      %1767 = vrot.lane.b32.xlu0 %v1758, 113
      %v1768 = vpop.permute.xlu0 %1767
      %1769 = vrot.lane.b32.xlu0 %v1766, 113
      %v1770 = vpop.permute.xlu0 %1769
      %1771 = vrot.lane.b32.xlu0 %v1765, 113
      %v1772 = vpop.permute.xlu0 %1771
      %v1773 = vsel %vm1005, %v1768, %v1770
      %v1774 = vsel %vm1005, %v1770, %v1772
      %v1776 = vsel %vm544, %v1749, 0
      %v1779 = vsel %vm548, %v1773, 0
      %v1782 = vsel %vm548, %v1774, 0
      %1784 = vmatprep.subr.bf16.mxu0 %v1782
      %1785 = vmatpush1.bf16.msra.mxu0 %v1779
      %1786 = vmatprep.subr.bf16.mxu0 0
      %1787 = vmatpush1.bf16.msra.mxu0 0
      %1788 = vmatprep.subr.bf16.mxu0 0
      %1789 = vmatpush1.bf16.msra.mxu0 0
      %1790 = vmatprep.subr.bf16.mxu0 0
      %1791 = vmatpush1.bf16.msra.mxu0 0
      %1792 = vmatprep.subr.bf16.mxu0 0
      %1793 = vmatpush1.bf16.msra.mxu0 0
      %1794 = vmatprep.subr.bf16.mxu0 0
      %1795 = vmatpush1.bf16.msra.mxu0 0
      %1796 = vmatprep.subr.bf16.mxu0 0
      %1797 = vmatpush1.bf16.msra.mxu0 0
      %1798 = vmatprep.subr.bf16.mxu0 0
      %1799 = vmatpush1.bf16.msra.mxu0 0
      %1800 = vmatprep.subr.bf16.mxu0 0
      %1801 = vmatpush1.bf16.msra.mxu0 0
      %1802 = vmatprep.subr.bf16.mxu0 0
      %1803 = vmatpush1.bf16.msra.mxu0 0
      %1804 = vmatprep.subr.bf16.mxu0 0
      %1805 = vmatpush1.bf16.msra.mxu0 0
      %1806 = vmatprep.subr.bf16.mxu0 0
      %1807 = vmatpush1.bf16.msra.mxu0 0
      %1808 = vmatprep.subr.bf16.mxu0 0
      %1809 = vmatpush1.bf16.msra.mxu0 0
      %1810 = vmatprep.subr.bf16.mxu0 0
      %1811 = vmatpush1.bf16.msra.mxu0 0
      %1812 = vmatprep.subr.bf16.mxu0 0
      %1813 = vmatpush1.bf16.msra.mxu0 0
      %1814 = vmatprep.subr.bf16.mxu0 0
      %1815 = vmatpush1.bf16.msra.mxu0 0
      %1816 = vmatprep.mubr.bf16.mxu0 0
      %1817 = vmatmul.mubr.bf16.gmra.mrb[0].mxu0 %v1776
      %v1818 = vpop.f32.mrb[0].mxu0
      %v1819 = vadd.f32 0.0, %v1818
      %v1820 = vpop.f32.mrb[0].mxu0
      %v1821 = vadd.f32 0.0, %v1820
      %v1822 = vpop.f32.mrb[0].mxu0
      %v1823 = vpop.f32.mrb[0].mxu0
      %1824 = vdwg.mxu0
      %v1825 = vadd.f32 %v1745, %v1819
      %v1826 = vadd.f32 %v1746, %v1821
      %v1827 = vld [vmem:[#allocation6 + $0x2] sm:$0x3f]
      %s1828 = scalar_lea.vmem %s2, 14
      %v1829 = vld [vmem:[%s1828] sm:$0x3]
      %v1831 = vcombine.high %v1827, %v1827
      %v1833 = vunpack.c.l.s4 1983009808
      %v1834 = vunpack.c.0.s8 %v1833
      %v1835 = vlaneseq
      %v1836 = vshrl.u32 %v1835, 7
      %v1837 = vsub.s32 %v1834, %v1836
      %v1838 = vrot.slane %v1827, %v1837
      %v1840 = vunpack.c.l.s4 1983009808
      %v1841 = vunpack.c.0.s8 %v1840
      %v1842 = vlaneseq
      %v1843 = vshrl.u32 %v1842, 7
      %v1844 = vsub.s32 %v1841, %v1843
      %v1845 = vrot.slane %v1831, %v1844
      %v1846 = vcombine.high %v1838, %v1838
      %1847 = vrot.lane.b32.xlu0 %v1838, 112
      %v1848 = vpop.permute.xlu0 %1847
      %1849 = vrot.lane.b32.xlu0 %v1846, 112
      %v1850 = vpop.permute.xlu0 %1849
      %1851 = vrot.lane.b32.xlu0 %v1845, 112
      %v1852 = vpop.permute.xlu0 %1851
      %v1853 = vsel %vm1086, %v1848, %v1850
      %v1854 = vsel %vm1086, %v1850, %v1852
      %v1856 = vsel %vm544, %v1829, 0
      %v1859 = vsel %vm548, %v1853, 0
      %v1862 = vsel %vm548, %v1854, 0
      %1864 = vmatprep.subr.bf16.mxu0 %v1862
      %1865 = vmatpush1.bf16.msra.mxu0 %v1859
      %1866 = vmatprep.subr.bf16.mxu0 0
      %1867 = vmatpush1.bf16.msra.mxu0 0
      %1868 = vmatprep.subr.bf16.mxu0 0
      %1869 = vmatpush1.bf16.msra.mxu0 0
      %1870 = vmatprep.subr.bf16.mxu0 0
      %1871 = vmatpush1.bf16.msra.mxu0 0
      %1872 = vmatprep.subr.bf16.mxu0 0
      %1873 = vmatpush1.bf16.msra.mxu0 0
      %1874 = vmatprep.subr.bf16.mxu0 0
      %1875 = vmatpush1.bf16.msra.mxu0 0
      %1876 = vmatprep.subr.bf16.mxu0 0
      %1877 = vmatpush1.bf16.msra.mxu0 0
      %1878 = vmatprep.subr.bf16.mxu0 0
      %1879 = vmatpush1.bf16.msra.mxu0 0
      %1880 = vmatprep.subr.bf16.mxu0 0
      %1881 = vmatpush1.bf16.msra.mxu0 0
      %1882 = vmatprep.subr.bf16.mxu0 0
      %1883 = vmatpush1.bf16.msra.mxu0 0
      %1884 = vmatprep.subr.bf16.mxu0 0
      %1885 = vmatpush1.bf16.msra.mxu0 0
      %1886 = vmatprep.subr.bf16.mxu0 0
      %1887 = vmatpush1.bf16.msra.mxu0 0
      %1888 = vmatprep.subr.bf16.mxu0 0
      %1889 = vmatpush1.bf16.msra.mxu0 0
      %1890 = vmatprep.subr.bf16.mxu0 0
      %1891 = vmatpush1.bf16.msra.mxu0 0
      %1892 = vmatprep.subr.bf16.mxu0 0
      %1893 = vmatpush1.bf16.msra.mxu0 0
      %1894 = vmatprep.subr.bf16.mxu0 0
      %1895 = vmatpush1.bf16.msra.mxu0 0
      %1896 = vmatprep.mubr.bf16.mxu0 0
      %1897 = vmatmul.mubr.bf16.gmra.mrb[0].mxu0 %v1856
      %v1898 = vpop.f32.mrb[0].mxu0
      %v1899 = vadd.f32 0.0, %v1898
      %v1900 = vpop.f32.mrb[0].mxu0
      %v1901 = vadd.f32 0.0, %v1900
      %v1902 = vpop.f32.mrb[0].mxu0
      %v1903 = vpop.f32.mrb[0].mxu0
      %1904 = vdwg.mxu0
      %v1905 = vadd.f32 %v1825, %v1899
      %v1906 = vadd.f32 %v1826, %v1901
      %v1907 = vld [vmem:[#allocation7 + $0x2] sm:$0x3f]
      %s1908 = scalar_lea.vmem %s2, 16
      %v1909 = vld [vmem:[%s1908] sm:$0x3]
      %v1911 = vcombine.high %v1907, %v1907
      %v1913 = vunpack.c.l.s4 1983009808
      %v1914 = vunpack.c.0.s8 %v1913
      %v1915 = vlaneseq
      %v1916 = vshrl.u32 %v1915, 7
      %v1917 = vsub.s32 %v1914, %v1916
      %v1918 = vrot.slane %v1907, %v1917
      %v1920 = vunpack.c.l.s4 1983009808
      %v1921 = vunpack.c.0.s8 %v1920
      %v1922 = vlaneseq
      %v1923 = vshrl.u32 %v1922, 7
      %v1924 = vsub.s32 %v1921, %v1923
      %v1925 = vrot.slane %v1911, %v1924
      %v1926 = vcombine.high %v1918, %v1918
      %1927 = vrot.lane.b32.xlu0 %v1918, 111
      %v1928 = vpop.permute.xlu0 %1927
      %1929 = vrot.lane.b32.xlu0 %v1926, 111
      %v1930 = vpop.permute.xlu0 %1929
      %1931 = vrot.lane.b32.xlu0 %v1925, 111
      %v1932 = vpop.permute.xlu0 %1931
      %v1933 = vsel %vm1167, %v1928, %v1930
      %v1934 = vsel %vm1167, %v1930, %v1932
      %v1936 = vsel %vm544, %v1909, 0
      %v1939 = vsel %vm548, %v1933, 0
      %v1942 = vsel %vm548, %v1934, 0
      %1944 = vmatprep.subr.bf16.mxu0 %v1942
      %1945 = vmatpush1.bf16.msra.mxu0 %v1939
      %1946 = vmatprep.subr.bf16.mxu0 0
      %1947 = vmatpush1.bf16.msra.mxu0 0
      %1948 = vmatprep.subr.bf16.mxu0 0
      %1949 = vmatpush1.bf16.msra.mxu0 0
      %1950 = vmatprep.subr.bf16.mxu0 0
      %1951 = vmatpush1.bf16.msra.mxu0 0
      %1952 = vmatprep.subr.bf16.mxu0 0
      %1953 = vmatpush1.bf16.msra.mxu0 0
      %1954 = vmatprep.subr.bf16.mxu0 0
      %1955 = vmatpush1.bf16.msra.mxu0 0
      %1956 = vmatprep.subr.bf16.mxu0 0
      %1957 = vmatpush1.bf16.msra.mxu0 0
      %1958 = vmatprep.subr.bf16.mxu0 0
      %1959 = vmatpush1.bf16.msra.mxu0 0
      %1960 = vmatprep.subr.bf16.mxu0 0
      %1961 = vmatpush1.bf16.msra.mxu0 0
      %1962 = vmatprep.subr.bf16.mxu0 0
      %1963 = vmatpush1.bf16.msra.mxu0 0
      %1964 = vmatprep.subr.bf16.mxu0 0
      %1965 = vmatpush1.bf16.msra.mxu0 0
      %1966 = vmatprep.subr.bf16.mxu0 0
      %1967 = vmatpush1.bf16.msra.mxu0 0
      %1968 = vmatprep.subr.bf16.mxu0 0
      %1969 = vmatpush1.bf16.msra.mxu0 0
      %1970 = vmatprep.subr.bf16.mxu0 0
      %1971 = vmatpush1.bf16.msra.mxu0 0
      %1972 = vmatprep.subr.bf16.mxu0 0
      %1973 = vmatpush1.bf16.msra.mxu0 0
      %1974 = vmatprep.subr.bf16.mxu0 0
      %1975 = vmatpush1.bf16.msra.mxu0 0
      %1976 = vmatprep.mubr.bf16.mxu0 0
      %1977 = vmatmul.mubr.bf16.gmra.mrb[0].mxu0 %v1936
      %v1978 = vpop.f32.mrb[0].mxu0
      %v1979 = vadd.f32 0.0, %v1978
      %v1980 = vpop.f32.mrb[0].mxu0
      %v1981 = vadd.f32 0.0, %v1980
      %v1982 = vpop.f32.mrb[0].mxu0
      %v1983 = vpop.f32.mrb[0].mxu0
      %1984 = vdwg.mxu0
      %v1985 = vadd.f32 %v1905, %v1979
      %v1986 = vadd.f32 %v1906, %v1981
      %1988 = vset.pattern.permute.xlu0 0
      %1989 = vperm.xlu0 %1988, %v1284
      %v1990 = vpop.permute.xlu0 %1989
      %v1992 = vmul.f32 %v1985, %v1990
      %v1993 = vmul.f32 %v1986, %v1990
      %1995 = vset.pattern.permute.xlu0 0
      %1996 = vperm.xlu0 %1995, %v1285
      %v1997 = vpop.permute.xlu0 %1996
      %v1999 = vadd.f32 %v1992, %v1997
      %v2000 = vadd.f32 %v1993, %v1997
      %v2003 = vcombine.low %v1999, %v2000
      %2005 = vst [vmem:[#allocation8] sm:$0xff] %v2003
      %v2006 = vld [vmem:[#allocation9] sm:$0xf]
      %vm2007 = vcmask 1043456
      %v2008 = vsel %vm2007, %v1999, 0.0
      %v2009 = vsel %vm2007, %v2000, 0.0
      %v2010 = vadd.f32 %v2008, %v2009
      %2011 = vadd.xlane.f32.xlu0 %v2010
      %v2012 = vpop.xlane.xlu0 %2011
      %v2013 = vadd.f32 %v2006, %v2012
      %2014 = vst.msk [vmem:[#allocation9] sm:$0xf] %vm1286, %v2013
      %v2015 = vld [vmem:[#allocation9] sm:$0xf]
      %v2016 = vmul.f32 %v2015, 0.00390625
      %v2017 = vld [vmem:[%s7] sm:$0xff]
      %v2018 = vld [vmem:[%s7 + $0x8] sm:$0xff]
      %v2019 = vld [vmem:[%s7 + $0x10] sm:$0xff]
      %v2020 = vld [vmem:[%s7 + $0x18] sm:$0xff]
      %v2021 = vld [vmem:[%s7 + $0x20] sm:$0xff]
      %v2022 = vld [vmem:[%s7 + $0x28] sm:$0xff]
      %v2023 = vld [vmem:[%s7 + $0x30] sm:$0xff]
      %v2024 = vld [vmem:[%s7 + $0x38] sm:$0xff]
      %v2025 = vld [vmem:[%s8] sm:$0xff]
      %v2026 = vld [vmem:[%s8 + $0x8] sm:$0xff]
      %v2027 = vld [vmem:[%s8 + $0x10] sm:$0xff]
      %v2028 = vld [vmem:[%s8 + $0x18] sm:$0xff]
      %v2029 = vld [vmem:[%s8 + $0x20] sm:$0xff]
      %v2030 = vld [vmem:[%s8 + $0x28] sm:$0xff]
      %v2031 = vld [vmem:[%s8 + $0x30] sm:$0xff]
      %v2032 = vld [vmem:[%s8 + $0x38] sm:$0xff]
      %v2034 = vsel %vm544, %v2017, 0
      %v2037 = vsel %vm544, %v2018, 0
      %v2040 = vsel %vm544, %v2019, 0
      %v2043 = vsel %vm544, %v2020, 0
      %v2046 = vsel %vm544, %v2021, 0
      %v2049 = vsel %vm544, %v2022, 0
      %v2052 = vsel %vm544, %v2023, 0
      %v2055 = vsel %vm544, %v2024, 0
      %v2058 = vsel %vm2007, %v2016, 0
      %2060 = vmatprep.subr.mxu0 0.0
      %2061 = vmatpush1.msra.mxu0 %v2058
      %2062 = vmatprep.subr.mxu0 0.0
      %2063 = vmatpush1.msra.mxu0 0.0
      %2064 = vmatprep.subr.mxu0 0.0
      %2065 = vmatpush1.msra.mxu0 0.0
      %2066 = vmatprep.subr.mxu0 0.0
      %2067 = vmatpush1.msra.mxu0 0.0
      %2068 = vmatprep.subr.mxu0 0.0
      %2069 = vmatpush1.msra.mxu0 0.0
      %2070 = vmatprep.subr.mxu0 0.0
      %2071 = vmatpush1.msra.mxu0 0.0
      %2072 = vmatprep.subr.mxu0 0.0
      %2073 = vmatpush1.msra.mxu0 0.0
      %2074 = vmatprep.subr.mxu0 0.0
      %2075 = vmatpush1.msra.mxu0 0.0
      %2076 = vmatprep.subr.mxu0 0.0
      %2077 = vmatpush1.msra.mxu0 0.0
      %2078 = vmatprep.subr.mxu0 0.0
      %2079 = vmatpush1.msra.mxu0 0.0
      %2080 = vmatprep.subr.mxu0 0.0
      %2081 = vmatpush1.msra.mxu0 0.0
      %2082 = vmatprep.subr.mxu0 0.0
      %2083 = vmatpush1.msra.mxu0 0.0
      %2084 = vmatprep.subr.mxu0 0.0
      %2085 = vmatpush1.msra.mxu0 0.0
      %2086 = vmatprep.subr.mxu0 0.0
      %2087 = vmatpush1.msra.mxu0 0.0
      %2088 = vmatprep.subr.mxu0 0.0
      %2089 = vmatpush1.msra.mxu0 0.0
      %2090 = vmatprep.subr.mxu0 0.0
      %2091 = vmatpush1.msra.mxu0 0.0
      %2092 = vmatprep.subr.mxu0 0.0
      %2093 = vmatpush1.msra.mxu0 0.0
      %2094 = vmatprep.subr.mxu0 0.0
      %2095 = vmatpush1.msra.mxu0 0.0
      %2096 = vmatprep.subr.mxu0 0.0
      %2097 = vmatpush1.msra.mxu0 0.0
      %2098 = vmatprep.subr.mxu0 0.0
      %2099 = vmatpush1.msra.mxu0 0.0
      %2100 = vmatprep.subr.mxu0 0.0
      %2101 = vmatpush1.msra.mxu0 0.0
      %2102 = vmatprep.subr.mxu0 0.0
      %2103 = vmatpush1.msra.mxu0 0.0
      %2104 = vmatprep.subr.mxu0 0.0
      %2105 = vmatpush1.msra.mxu0 0.0
      %2106 = vmatprep.subr.mxu0 0.0
      %2107 = vmatpush1.msra.mxu0 0.0
      %2108 = vmatprep.subr.mxu0 0.0
      %2109 = vmatpush1.msra.mxu0 0.0
      %2110 = vmatprep.subr.mxu0 0.0
      %2111 = vmatpush1.msra.mxu0 0.0
      %2112 = vmatprep.subr.mxu0 0.0
      %2113 = vmatpush1.msra.mxu0 0.0
      %2114 = vmatprep.subr.mxu0 0.0
      %2115 = vmatpush1.msra.mxu0 0.0
      %2116 = vmatprep.subr.mxu0 0.0
      %2117 = vmatpush1.msra.mxu0 0.0
      %2118 = vmatprep.subr.mxu0 0.0
      %2119 = vmatpush1.msra.mxu0 0.0
      %2120 = vmatprep.subr.mxu0 0.0
      %2121 = vmatpush1.msra.mxu0 0.0
      %2122 = vmatprep.subr.mxu0 0.0
      %2123 = vmatpush1.msra.mxu0 0.0
      %2124 = vmatprep.mubr.f32.mxu0 0.0
      %2125 = vmatmul.mubr.f32.gmra.mrb[0].mxu0 %v2034
      %v2126 = vpop.f32.mrb[0].mxu0
      %v2127 = vadd.f32 %v2025, %v2126
      %v2128 = vpop.f32.mrb[0].mxu0
      %2129 = vmatprep.mubr.f32.mxu0 0.0
      %2130 = vmatmul.mubr.f32.gmra.mrb[0].mxu0 %v2037
      %v2131 = vpop.f32.mrb[0].mxu0
      %v2132 = vadd.f32 %v2026, %v2131
      %v2133 = vpop.f32.mrb[0].mxu0
      %2134 = vmatprep.mubr.f32.mxu0 0.0
      %2135 = vmatmul.mubr.f32.gmra.mrb[0].mxu0 %v2040
      %v2136 = vpop.f32.mrb[0].mxu0
      %v2137 = vadd.f32 %v2027, %v2136
      %v2138 = vpop.f32.mrb[0].mxu0
      %2139 = vmatprep.mubr.f32.mxu0 0.0
      %2140 = vmatmul.mubr.f32.gmra.mrb[0].mxu0 %v2043
      %v2141 = vpop.f32.mrb[0].mxu0
      %v2142 = vadd.f32 %v2028, %v2141
      %v2143 = vpop.f32.mrb[0].mxu0
      %2144 = vmatprep.mubr.f32.mxu0 0.0
      %2145 = vmatmul.mubr.f32.gmra.mrb[0].mxu0 %v2046
      %v2146 = vpop.f32.mrb[0].mxu0
      %v2147 = vadd.f32 %v2029, %v2146
      %v2148 = vpop.f32.mrb[0].mxu0
      %2149 = vmatprep.mubr.f32.mxu0 0.0
      %2150 = vmatmul.mubr.f32.gmra.mrb[0].mxu0 %v2049
      %v2151 = vpop.f32.mrb[0].mxu0
      %v2152 = vadd.f32 %v2030, %v2151
      %v2153 = vpop.f32.mrb[0].mxu0
      %2154 = vmatprep.mubr.f32.mxu0 0.0
      %2155 = vmatmul.mubr.f32.gmra.mrb[0].mxu0 %v2052
      %v2156 = vpop.f32.mrb[0].mxu0
      %v2157 = vadd.f32 %v2031, %v2156
      %v2158 = vpop.f32.mrb[0].mxu0
      %2159 = vmatprep.mubr.f32.mxu0 0.0
      %2160 = vmatmul.mubr.f32.gmra.mrb[0].mxu0 %v2055
      %v2161 = vpop.f32.mrb[0].mxu0
      %v2162 = vadd.f32 %v2032, %v2161
      %v2163 = vpop.f32.mrb[0].mxu0
      %2164 = vdwg.mxu0
      %v2165 = vmax.f32 %v2127, 0.0
      %v2166 = vmax.f32 %v2132, 0.0
      %v2167 = vmax.f32 %v2137, 0.0
      %v2168 = vmax.f32 %v2142, 0.0
      %v2169 = vmax.f32 %v2147, 0.0
      %v2170 = vmax.f32 %v2152, 0.0
      %v2171 = vmax.f32 %v2157, 0.0
      %v2172 = vmax.f32 %v2162, 0.0
      %v2173 = vld [vmem:[%s9] sm:$0xf]
      %v2174 = vld [vmem:[%s10] sm:$0xf]
      %vm2175 = vcmask 523264
      %v2177 = vsel %vm2175, %v2173, 0
      %2179 = vmatprep.subr.mxu0 0.0
      %2180 = vmatpush1.msra.mxu0 %v2165
      %2181 = vmatprep.subr.mxu0 0.0
      %2182 = vmatpush1.msra.mxu0 %v2166
      %2183 = vmatprep.subr.mxu0 0.0
      %2184 = vmatpush1.msra.mxu0 %v2167
      %2185 = vmatprep.subr.mxu0 0.0
      %2186 = vmatpush1.msra.mxu0 %v2168
      %2187 = vmatprep.subr.mxu0 0.0
      %2188 = vmatpush1.msra.mxu0 %v2169
      %2189 = vmatprep.subr.mxu0 0.0
      %2190 = vmatpush1.msra.mxu0 %v2170
      %2191 = vmatprep.subr.mxu0 0.0
      %2192 = vmatpush1.msra.mxu0 %v2171
      %2193 = vmatprep.subr.mxu0 0.0
      %2194 = vmatpush1.msra.mxu0 %v2172
      %2195 = vmatprep.subr.mxu0 0.0
      %2196 = vmatpush1.msra.mxu0 0.0
      %2197 = vmatprep.subr.mxu0 0.0
      %2198 = vmatpush1.msra.mxu0 0.0
      %2199 = vmatprep.subr.mxu0 0.0
      %2200 = vmatpush1.msra.mxu0 0.0
      %2201 = vmatprep.subr.mxu0 0.0
      %2202 = vmatpush1.msra.mxu0 0.0
      %2203 = vmatprep.subr.mxu0 0.0
      %2204 = vmatpush1.msra.mxu0 0.0
      %2205 = vmatprep.subr.mxu0 0.0
      %2206 = vmatpush1.msra.mxu0 0.0
      %2207 = vmatprep.subr.mxu0 0.0
      %2208 = vmatpush1.msra.mxu0 0.0
      %2209 = vmatprep.subr.mxu0 0.0
      %2210 = vmatpush1.msra.mxu0 0.0
      %2211 = vmatprep.subr.mxu0 0.0
      %2212 = vmatpush1.msra.mxu0 0.0
      %2213 = vmatprep.subr.mxu0 0.0
      %2214 = vmatpush1.msra.mxu0 0.0
      %2215 = vmatprep.subr.mxu0 0.0
      %2216 = vmatpush1.msra.mxu0 0.0
      %2217 = vmatprep.subr.mxu0 0.0
      %2218 = vmatpush1.msra.mxu0 0.0
      %2219 = vmatprep.subr.mxu0 0.0
      %2220 = vmatpush1.msra.mxu0 0.0
      %2221 = vmatprep.subr.mxu0 0.0
      %2222 = vmatpush1.msra.mxu0 0.0
      %2223 = vmatprep.subr.mxu0 0.0
      %2224 = vmatpush1.msra.mxu0 0.0
      %2225 = vmatprep.subr.mxu0 0.0
      %2226 = vmatpush1.msra.mxu0 0.0
      %2227 = vmatprep.subr.mxu0 0.0
      %2228 = vmatpush1.msra.mxu0 0.0
      %2229 = vmatprep.subr.mxu0 0.0
      %2230 = vmatpush1.msra.mxu0 0.0
      %2231 = vmatprep.subr.mxu0 0.0
      %2232 = vmatpush1.msra.mxu0 0.0
      %2233 = vmatprep.subr.mxu0 0.0
      %2234 = vmatpush1.msra.mxu0 0.0
      %2235 = vmatprep.subr.mxu0 0.0
      %2236 = vmatpush1.msra.mxu0 0.0
      %2237 = vmatprep.subr.mxu0 0.0
      %2238 = vmatpush1.msra.mxu0 0.0
      %2239 = vmatprep.subr.mxu0 0.0
      %2240 = vmatpush1.msra.mxu0 0.0
      %2241 = vmatprep.subr.mxu0 0.0
      %2242 = vmatpush1.msra.mxu0 0.0
      %2243 = vmatprep.mubr.f32.mxu0 0.0
      %2244 = vmatmul.mubr.f32.gmra.mrb[0].mxu0 %v2177
      %v2245 = vpop.f32.mrb[0].mxu0
      %v2246 = vadd.f32 %v2174, %v2245
      %v2247 = vpop.f32.mrb[0].mxu0
      %2248 = vdwg.mxu0
      %v2249 = vxor.u32 %v2246, 2147483648
      %v2250 = vmul.f32 %v2249, 1.442695
      %v2251 = vpow.pop %v2250
      %v2252 = vadd.f32 %v2251, 1.0
      %v2253 = vrcp.pop %v2252
      %v2254 = vmul.f32 1.0, %v2253
      %v2255 = vld [vmem:[%s381] sm:$0xff]
      %v2256 = vld [vmem:[#allocation8] sm:$0xff]
      %2258 = vset.pattern.permute.xlu0 0
      %2259 = vperm.xlu0 %2258, %v2254
      %v2260 = vpop.permute.xlu0 %2259
      %v2262 = vunpack.c.l.s4 839922192
      %v2263 = vunpack.c.0.s8 %v2262
      %v2264 = vlaneseq
      %v2265 = vshrl.u32 %v2264, 7
      %v2266 = vsub.s32 %v2263, %v2265
      %v2267 = vrot.slane %v2260, %v2266
      %v2269 = vmul.f32 %v2256, %v2267
      %v2270 = vadd.f32 %v2269, %v2255
      %v2271 = vmax.f32 %v2270, 0.0
      %2272 = vst [vmem:[%s386] sm:$0xff] %v2271
      %p2273 = scmp.lt.s32.totalorder %s22, 1
      %s2274 = scalar_select %p2273, %s22, 1
      %s2275 = smul.addr %s2274, 2
      %s2276 = smul.addr %s2275, 4
      %s2277 = scalar_lea.vmem %s11, %s2276
      // Predicated region
      $region65: #{basic_block_forward.1} parent=63 // pred_check
        %p2278 = pneg %p276
      $region66: #{basic_block_forward.1} parent=63 // pred_check_branch
        %2280 = sbr.rel (%p2278) target = $region68
      $region67: #{basic_block_forward.1} parent=63 // pred_region
        _
      $region68: #{basic_block_forward.1} parent=63 // pred_fallthru
        _
    $region64: #{basic_block_forward.1} parent=5 // pred_fallthru
      _
    %p2281 = scmp.le.s32.totalorder 2, %s17
    // Predicated region
    $region69: #{basic_block_forward.1} parent=5 // pred_check
      %p2282 = pneg %p2281
    $region70: #{basic_block_forward.1} parent=5 // pred_check_branch
      %2284 = sbr.rel (%p2282) target = $region72
    $region71: #{basic_block_forward.1} parent=5 // pred_region
      %s2285 = ssub.s32 %s17, 2
      // Predicated region
      $region73: #{basic_block_forward.1} parent=71 // pred_check
        %p2286 = pneg %p282
      $region74: #{basic_block_forward.1} parent=71 // pred_check_branch
        %2288 = sbr.rel (%p2286) target = $region76
      $region75: #{basic_block_forward.1} parent=71 // pred_region
        %p2289 = scmp.lt.s32.totalorder %s23, 1
        %s2290 = scalar_select %p2289, %s23, 1
        %s2291 = smul.addr %s2290, 2
        %s2292 = smul.addr %s2291, 4
        %s2293 = scalar_lea.vmem %s11, %s2292
      $region76: #{basic_block_forward.1} parent=71 // pred_fallthru
        _
    $region72: #{basic_block_forward.1} parent=5 // pred_fallthru
      _
  $region6: #{basic_block_forward.1} parent=0 // loop_footer
    %s21 = sadd.s32 1, %s17
  $region7: #{basic_block_forward.1} parent=0 // loop_footer_branch
    %16 = sbr.rel target = $region3
  $region8: #{basic_block_forward.1} parent=0 // loop_exit
    _

</llo_original>
